<compile_context>
chip_gen: v7x
topology: tpu7x:2x2x1
jax: 0.10.0
libtpu: 0.0.40
codegen_flags: <defaults>
</compile_context>

<pallas_src>
import functools

import jax
import jax.numpy as jnp
from jax.experimental import pallas as pl
from jax.experimental.pallas import tpu as pltpu

LEAKY_SLOPE = 0.01            # torch.nn.LeakyReLU default negative_slope
LANE = 128                    # TPU lane width
MAX_ROW_BLOCK = 512           # row tile cap (weights are resident; VMEM is not binding)
MATMUL_DTYPE = jnp.bfloat16   # MXU operand dtype in the fused MLP (f32 accumulation)


# ------------------------------- helpers ----------------------------------- #

def _round_up(x, m):
    return (x + m - 1) // m * m


def _row_block(r):
    """Row tile: >= 2 grid steps (v7x has 2 TensorCores), capped at MAX_ROW_BLOCK."""
    half = _round_up(max(1, -(-r // 2)), 8)
    return max(8, min(MAX_ROW_BLOCK, half))


# ----------------------------- Pallas kernels ------------------------------ #

def _linear_kernel(x_ref, w_ref, b_ref, o_ref):
    # f32 on purpose: W_aug passes elem_weights through exactly (identity column).
    o_ref[...] = (
        jnp.dot(x_ref[...], w_ref[...], preferred_element_type=jnp.float32)
        + b_ref[...]
    ).astype(o_ref.dtype)


def _leaky_relu(h):
    # mul + max instead of compare + select (one fewer VALU op / element).
    return jnp.maximum(h, LEAKY_SLOPE * h)


def _mlp1_kernel(x_ref, w1_ref, b1_ref, w2_ref, b2_ref, o_ref):
    # Fused (all heads, gate+message) Linear -> LeakyReLU -> block-diagonal Linear.
    # bf16 MXU operands (weights are stored bf16), f32 accumulation & elementwise.
    h = jnp.dot(x_ref[...].astype(MATMUL_DTYPE), w1_ref[...],
                preferred_element_type=jnp.float32) + b1_ref[...]
    h = _leaky_relu(h)
    o_ref[...] = (
        jnp.dot(h.astype(MATMUL_DTYPE), w2_ref[...],
                preferred_element_type=jnp.float32) + b2_ref[...]
    ).astype(o_ref.dtype)


def _mlp2_kernel(xa_ref, xb_ref, w1a_ref, w1b_ref, b1_ref, w2_ref, b2_ref, o_ref):
    # Same as _mlp1_kernel but the input is the *virtual* concat [xa, xb]: W1 is split
    # into top/bottom halves and the two partial products are summed in f32 — the
    # (M, 2F) concat buffer is never materialized in HBM.
    h = (jnp.dot(xa_ref[...].astype(MATMUL_DTYPE), w1a_ref[...],
                 preferred_element_type=jnp.float32)
         + jnp.dot(xb_ref[...].astype(MATMUL_DTYPE), w1b_ref[...],
                   preferred_element_type=jnp.float32)
         + b1_ref[...])
    h = _leaky_relu(h)
    o_ref[...] = (
        jnp.dot(h.astype(MATMUL_DTYPE), w2_ref[...],
                preferred_element_type=jnp.float32) + b2_ref[...]
    ).astype(o_ref.dtype)


# ----------------------------- Pallas wrappers ------------------------------ #

def pallas_linear(x, w, b):
    """y = x @ w + b, row-tiled with masked boundary blocks (no explicit padding)."""
    r, din = x.shape
    dout = w.shape[1]
    rb = _row_block(r)
    flops = 2 * r * din * dout
    bytes_accessed = 4 * (r * din + din * dout + dout + r * dout)
    return pl.pallas_call(
        _linear_kernel,
        out_shape=jax.ShapeDtypeStruct((r, dout), jnp.float32),
        grid=(pl.cdiv(r, rb),),
        in_specs=[
            pl.BlockSpec((rb, din), lambda i: (i, 0)),
            pl.BlockSpec((din, dout), lambda i: (0, 0)),
            pl.BlockSpec((1, dout), lambda i: (0, 0)),
        ],
        out_specs=pl.BlockSpec((rb, dout), lambda i: (i, 0)),
        compiler_params=pltpu.CompilerParams(dimension_semantics=("parallel",)),
        cost_estimate=pl.CostEstimate(flops=flops, transcendentals=0,
                                      bytes_accessed=bytes_accessed),
    )(x, w, b.reshape(1, dout))


def pallas_mlp1(x, w1, b1, w2, b2):
    """y = leaky_relu(x @ w1 + b1) @ w2 + b2 (fused, single input)."""
    r, din = x.shape
    dh = w1.shape[1]
    dout = w2.shape[1]
    rb = _row_block(r)
    flops = 2 * r * (din * dh + dh * dout)
    bytes_accessed = (4 * (r * din + dh + dout + r * dout)
                      + 2 * (din * dh + dh * dout))        # bf16 weights
    return pl.pallas_call(
        _mlp1_kernel,
        out_shape=jax.ShapeDtypeStruct((r, dout), jnp.float32),
        grid=(pl.cdiv(r, rb),),
        in_specs=[
            pl.BlockSpec((rb, din), lambda i: (i, 0)),
            pl.BlockSpec((din, dh), lambda i: (0, 0)),
            pl.BlockSpec((1, dh), lambda i: (0, 0)),
            pl.BlockSpec((dh, dout), lambda i: (0, 0)),
            pl.BlockSpec((1, dout), lambda i: (0, 0)),
        ],
        out_specs=pl.BlockSpec((rb, dout), lambda i: (i, 0)),
        compiler_params=pltpu.CompilerParams(dimension_semantics=("parallel",)),
        cost_estimate=pl.CostEstimate(flops=flops, transcendentals=0,
                                      bytes_accessed=bytes_accessed),
    )(x, w1, b1.reshape(1, dh), w2, b2.reshape(1, dout))


def pallas_mlp2(xa, xb, w1a, w1b, b1, w2, b2):
    """y = leaky_relu([xa, xb] @ w1 + b1) @ w2 + b2, without materializing the concat."""
    r, da = xa.shape
    db = xb.shape[1]
    dh = w1a.shape[1]
    dout = w2.shape[1]
    rb = _row_block(r)
    flops = 2 * r * ((da + db) * dh + dh * dout)
    bytes_accessed = (4 * (r * (da + db) + dh + dout + r * dout)
                      + 2 * ((da + db) * dh + dh * dout))   # bf16 weights
    return pl.pallas_call(
        _mlp2_kernel,
        out_shape=jax.ShapeDtypeStruct((r, dout), jnp.float32),
        grid=(pl.cdiv(r, rb),),
        in_specs=[
            pl.BlockSpec((rb, da), lambda i: (i, 0)),
            pl.BlockSpec((rb, db), lambda i: (i, 0)),
            pl.BlockSpec((da, dh), lambda i: (0, 0)),
            pl.BlockSpec((db, dh), lambda i: (0, 0)),
            pl.BlockSpec((1, dh), lambda i: (0, 0)),
            pl.BlockSpec((dh, dout), lambda i: (0, 0)),
            pl.BlockSpec((1, dout), lambda i: (0, 0)),
        ],
        out_specs=pl.BlockSpec((rb, dout), lambda i: (i, 0)),
        compiler_params=pltpu.CompilerParams(dimension_semantics=("parallel",)),
        cost_estimate=pl.CostEstimate(flops=flops, transcendentals=0,
                                      bytes_accessed=bytes_accessed),
    )(xa, xb, w1a, w1b, b1.reshape(1, dh), w2, b2.reshape(1, dout))


# ------------------------- parameter initialization ------------------------ #

def _init_linear(key, din, dout, scale=0.1):
    kw, kb = jax.random.split(key)
    w = scale * jax.random.normal(kw, (din, dout), jnp.float32)
    b = scale * jax.random.normal(kb, (dout,), jnp.float32)
    return {"w": w, "b": b}


def _init_simple_network(key, din, dout, hidden):
    # SimpleNetwork with one hidden layer (matches default configs, e.g. [256]).
    assert len(hidden) == 1
    k1, k2 = jax.random.split(key)
    return {"l1": _init_linear(k1, din, hidden[0]),
            "l2": _init_linear(k2, hidden[0], dout)}


def _init_attn_pool(key, fea_in, fea_out, gate_hidden, msg_hidden):
    kg, km, kp = jax.random.split(key, 3)
    return {"gate": _init_simple_network(kg, fea_in, 1, gate_hidden),
            "message": _init_simple_network(km, fea_in, fea_out, msg_hidden),
            "pow": jax.random.normal(kp, (), jnp.float32)}


def _pack_heads(heads, fea_in, fea_out, split_at=None):
    """Pack all heads' gate+message SimpleNetworks into one lane-dense fused MLP.

    Hidden layout : [h0_gate | h0_msg | h1_gate | h1_msg | ...]  padded to 128.
    Output layout : [gate_0 .. gate_{H-1} | msg_0 (F) | msg_1 (F) ...]  padded to 128.
    W2 is block-diagonal so one matmul yields every head's gate and message outputs.
    Zero padding is inert: leaky_relu(0)=0 and padded W2 rows/cols are zero.
    Weights are stored bf16 (MXU operands); biases stay f32.
    If split_at is given, W1 is stored split at that input row (virtual concat).
    """
    H = len(heads)
    dh_g = heads[0]["gate"]["l1"]["w"].shape[1]
    dh_m = heads[0]["message"]["l1"]["w"].shape[1]
    hid = _round_up(H * (dh_g + dh_m), LANE)
    outp = _round_up(H * (1 + fea_out), LANE)

    w1 = jnp.zeros((fea_in, hid), jnp.float32)
    b1 = jnp.zeros((hid,), jnp.float32)
    w2 = jnp.zeros((hid, outp), jnp.float32)
    b2 = jnp.zeros((outp,), jnp.float32)
    pw = []
    for h, hp in enumerate(heads):
        g1, g2 = hp["gate"]["l1"], hp["gate"]["l2"]
        m1, m2 = hp["message"]["l1"], hp["message"]["l2"]
        goff = h * (dh_g + dh_m)
        moff = goff + dh_g
        w1 = w1.at[:, goff:goff + dh_g].set(g1["w"])
        b1 = b1.at[goff:goff + dh_g].set(g1["b"])
        w1 = w1.at[:, moff:moff + dh_m].set(m1["w"])
        b1 = b1.at[moff:moff + dh_m].set(m1["b"])
        w2 = w2.at[goff:goff + dh_g, h:h + 1].set(g2["w"])
        b2 = b2.at[h].set(g2["b"][0])
        col = H + h * fea_out
        w2 = w2.at[moff:moff + dh_m, col:col + fea_out].set(m2["w"])
        b2 = b2.at[col:col + fea_out].set(m2["b"])
        pw.append(hp["pow"])

    packed = {"b1": b1, "b2": b2,
              "w2": w2.astype(MATMUL_DTYPE),
              "pow": jnp.stack(pw)}
    if split_at is None:
        packed["w1"] = w1.astype(MATMUL_DTYPE)
    else:
        packed["w1_self"] = w1[:split_at].astype(MATMUL_DTYPE)
        packed["w1_nbr"] = w1[split_at:].astype(MATMUL_DTYPE)
    return packed


def init_descriptor_network(key, elem_emb_len, elem_fea_len, n_graph, elem_heads,
                            elem_gate, elem_msg, cry_heads, cry_gate, cry_msg):
    keys = jax.random.split(key, 2 + n_graph)

    # Embedding Linear(emb_len -> F-1), fused with the weights concat:
    # [x, w] @ W_aug + b_aug == [x @ W + b, w]   (kept f32 so the identity column is exact)
    emb = _init_linear(keys[0], elem_emb_len, elem_fea_len - 1)
    w_aug = jnp.zeros((elem_emb_len + 1, elem_fea_len), jnp.float32)
    w_aug = w_aug.at[:elem_emb_len, :elem_fea_len - 1].set(emb["w"])
    w_aug = w_aug.at[elem_emb_len, elem_fea_len - 1].set(1.0)
    b_aug = jnp.zeros((elem_fea_len,), jnp.float32).at[:elem_fea_len - 1].set(emb["b"])
    params = {"embedding": {"w": w_aug, "b": b_aug}}

    graphs = []
    for g in range(n_graph):
        hkeys = jax.random.split(keys[1 + g], elem_heads)
        heads = [_init_attn_pool(hk, 2 * elem_fea_len, elem_fea_len, elem_gate, elem_msg)
                 for hk in hkeys]
        graphs.append(_pack_heads(heads, 2 * elem_fea_len, elem_fea_len,
                                  split_at=elem_fea_len))
    params["graphs"] = graphs

    ckeys = jax.random.split(keys[-1], cry_heads)
    cheads = [_init_attn_pool(ck, elem_fea_len, elem_fea_len, cry_gate, cry_msg)
              for ck in ckeys]
    params["cry_pool"] = _pack_heads(cheads, elem_fea_len, elem_fea_len)
    return params


# ----------------------------- model forward -------------------------------- #

def _fused_heads_single(x, packed, fea_out):
    """One Pallas call computing every head's gate (scalar) and message (F-dim) output."""
    H = packed["pow"].shape[0]
    out = pallas_mlp1(x, packed["w1"], packed["b1"], packed["w2"], packed["b2"])
    gates = out[:, :H]
    msgs = out[:, H:H + H * fea_out].reshape(x.shape[0], H, fea_out)
    return gates, msgs


def _fused_heads_pair(x_self, x_nbr, packed, fea_out):
    """Same, with the [self, nbr] concat handled inside the kernel via split W1."""
    H = packed["pow"].shape[0]
    out = pallas_mlp2(x_self, x_nbr, packed["w1_self"], packed["w1_nbr"],
                      packed["b1"], packed["w2"], packed["b2"])
    gates = out[:, :H]
    msgs = out[:, H:H + H * fea_out].reshape(x_self.shape[0], H, fea_out)
    return gates, msgs


def _weighted_attention_pool_multi(gates, msgs, index, weights, pw, num_segments):
    """WeightedAttentionPooling vectorised across heads.

    gates: (R, H), msgs: (R, H, F), weights: (R, 1), pw: (H,). Returns mean over heads (S, F).
    Matches the PyTorch reference exactly: pow > 0 -> weights**pow * exp(gate);
    otherwise (incl. pow == 0) -> 1/(weights**|pow| + 1e-10) * exp(gate).
    """
    # TODO(synk): scatter_max / scatter_add segment reductions are data-dependent; kept in JAX.
    seg_max = jax.ops.segment_max(gates, index, num_segments=num_segments)      # (S, H)
    gate = gates - seg_max[index]
    # weights > 0 and gate <= 0, so both branches are finite -> jnp.where is safe.
    gpos = (weights ** pw) * jnp.exp(gate)                                      # (R, H)
    gneg = (1.0 / (weights ** jnp.abs(pw) + 1e-10)) * jnp.exp(gate)
    gate = jnp.where(pw > 0, gpos, gneg)
    seg_sum = jax.ops.segment_sum(gate, index, num_segments=num_segments)       # (S, H)
    gate = gate / (seg_sum[index] + 1e-10)
    pooled = jax.ops.segment_sum(gate[:, :, None] * msgs, index,
                                 num_segments=num_segments)                     # (S, H, F)
    return jnp.mean(pooled, axis=1)                                             # (S, F)


def _message_layer(elem_weights, elem_in_fea, self_fea_idx, nbr_fea_idx, packed, num_nodes):
    fea_len = elem_in_fea.shape[1]
    nbr_w = jnp.take(elem_weights, nbr_fea_idx, axis=0)                         # (M, 1)
    self_fea = jnp.take(elem_in_fea, self_fea_idx, axis=0)                      # (M, F)
    nbr_fea = jnp.take(elem_in_fea, nbr_fea_idx, axis=0)                        # (M, F)
    gates, msgs = _fused_heads_pair(self_fea, nbr_fea, packed, fea_len)
    pooled = _weighted_attention_pool_multi(gates, msgs, self_fea_idx, nbr_w,
                                            packed["pow"], num_nodes)           # (N, F)
    return pooled + elem_in_fea


def descriptor_network_forward(params, elem_weights, elem_fea, self_fea_idx,
                               nbr_fea_idx, cry_elem_idx, num_crystals):
    n_nodes = elem_fea.shape[0]
    fea_len = params["embedding"]["w"].shape[1]
    # Fused embedding + weights concat (augmented weight matrix).
    x_aug = jnp.concatenate([elem_fea, elem_weights], axis=1)                   # (N, emb+1)
    elem_hidden = pallas_linear(x_aug, params["embedding"]["w"], params["embedding"]["b"])
    for packed in params["graphs"]:
        elem_hidden = _message_layer(elem_weights, elem_hidden, self_fea_idx,
                                     nbr_fea_idx, packed, n_nodes)
    gates, msgs = _fused_heads_single(elem_hidden, params["cry_pool"], fea_len)
    return _weighted_attention_pool_multi(gates, msgs, cry_elem_idx, elem_weights,
                                          params["cry_pool"]["pow"], num_crystals)


# ----------------------------------- main ----------------------------------- #

if __name__ == "__main__":
    # Small, deterministic configuration (module defaults shrunk for speed).
    ELEM_EMB_LEN = 16
    ELEM_FEA_LEN = 32
    N_GRAPH = 2
    ELEM_HEADS = 2
    CRY_HEADS = 2
    ELEM_GATE = [64]
    ELEM_MSG = [64]
    CRY_GATE = [64]
    CRY_MSG = [64]

    N = 10   # nodes (elements)
    M = 30   # edges (pairs)
    C = 3    # crystals

    key = jax.random.PRNGKey(0)
    kparam, kw, kfea, ks, kn = jax.random.split(key, 5)

    params = init_descriptor_network(
        kparam, ELEM_EMB_LEN, ELEM_FEA_LEN, N_GRAPH, ELEM_HEADS,
        ELEM_GATE, ELEM_MSG, CRY_HEADS, CRY_GATE, CRY_MSG,
    )

    elem_weights = jax.random.uniform(kw, (N, 1), jnp.float32, 0.05, 1.0)  # positive fractions
    elem_fea = jax.random.normal(kfea, (N, ELEM_EMB_LEN), jnp.float32)
    self_fea_idx = jax.random.randint(ks, (M,), 0, N, jnp.int32)
    nbr_fea_idx = jax.random.randint(kn, (M,), 0, N, jnp.int32)
    cry_elem_idx = (jnp.arange(N, dtype=jnp.int32) % C)  # every crystal non-empty

    fwd = jax.jit(functools.partial(descriptor_network_forward, num_crystals=C))
    cry_fea = fwd(params, elem_weights, elem_fea, self_fea_idx, nbr_fea_idx, cry_elem_idx)
    cry_fea = jax.block_until_ready(cry_fea)

    assert cry_fea.shape == (C, ELEM_FEA_LEN)
    assert bool(jnp.all(jnp.isfinite(cry_fea)))
    print("KERNEL_OK")
</pallas_src>

<mosaic_0001>
module attributes {stable_mosaic.version = 11 : i64} {
  func.func @_linear_kernel(%arg0: i32, %arg1: memref<8x17xf32, #tpu.memory_space<vmem>>, %arg2: memref<17x32xf32, #tpu.memory_space<vmem>>, %arg3: memref<1x32xf32, #tpu.memory_space<vmem>>, %arg4: memref<8x32xf32, #tpu.memory_space<vmem>>) attributes {dimension_semantics = [#tpu.dimension_semantics<parallel>], iteration_bounds = array<i64: 2>, scalar_prefetch = 0 : i64, scratch_operands = 0 : i64, tpu.core_type = #tpu.core_type<tc>, window_params = [{transform_indices = @transform_0, window_bounds = array<i64: 8, 17>}, {pipeline_mode = #tpu.pipeline_mode<synchronous>, transform_indices = @transform_1, window_bounds = array<i64: 17, 32>}, {pipeline_mode = #tpu.pipeline_mode<synchronous>, transform_indices = @transform_2, window_bounds = array<i64: 1, 32>}, {transform_indices = @transform_3, window_bounds = array<i64: 8, 32>}]} {
    %c0 = arith.constant 0 : index
    %c0_0 = arith.constant 0 : index
    %0 = vector.load %arg1[%c0, %c0_0] : memref<8x17xf32, #tpu.memory_space<vmem>>, vector<8x17xf32>
    %c0_1 = arith.constant 0 : index
    %c0_2 = arith.constant 0 : index
    %1 = vector.load %arg2[%c0_1, %c0_2] : memref<17x32xf32, #tpu.memory_space<vmem>>, vector<17x32xf32>
    %cst = arith.constant dense<0.000000e+00> : vector<8x32xf32>
    %2 = tpu.matmul %0, %1, %cst {dimension_numbers = #tpu.dot_dimension_numbers<[1], [0], [0], [1], [0, 0, 1, 1], [], []>} : vector<8x17xf32>, vector<17x32xf32>, vector<8x32xf32> -> vector<8x32xf32>
    %c0_3 = arith.constant 0 : index
    %c0_4 = arith.constant 0 : index
    %3 = vector.load %arg3[%c0_3, %c0_4] : memref<1x32xf32, #tpu.memory_space<vmem>>, vector<1x32xf32>
    %4 = vector.broadcast %3 : vector<1x32xf32> to vector<8x32xf32>
    %5 = arith.addf %2, %4 : vector<8x32xf32>
    %c0_5 = arith.constant 0 : index
    %c0_6 = arith.constant 0 : index
    %6 = vector.load %arg4[%c0_5, %c0_6] : memref<8x32xf32, #tpu.memory_space<vmem>>, vector<8x32xf32>
    tpu.vector_store %arg4[%c0_5, %c0_6], %5 {strides = array<i32>} : memref<8x32xf32, #tpu.memory_space<vmem>>, vector<8x32xf32>,
    return
  }
  func.func @transform_0(%arg0: i32) -> (i32, i32) {
    %c0_i32 = arith.constant 0 : i32
    %c0_i32_0 = arith.constant 0 : i32
    return %arg0, %c0_i32 : i32, i32
  }
  func.func @transform_1(%arg0: i32) -> (i32, i32) {
    %c0_i32 = arith.constant 0 : i32
    %c0_i32_0 = arith.constant 0 : i32
    %c0_i32_1 = arith.constant 0 : i32
    return %c0_i32, %c0_i32_0 : i32, i32
  }
  func.func @transform_2(%arg0: i32) -> (i32, i32) {
    %c0_i32 = arith.constant 0 : i32
    %c0_i32_0 = arith.constant 0 : i32
    %c0_i32_1 = arith.constant 0 : i32
    return %c0_i32, %c0_i32_0 : i32, i32
  }
  func.func @transform_3(%arg0: i32) -> (i32, i32) {
    %c0_i32 = arith.constant 0 : i32
    %c0_i32_0 = arith.constant 0 : i32
    return %arg0, %c0_i32 : i32, i32
  }
}

module attributes {stable_mosaic.version = 11 : i64} {
  func.func @_mlp2_kernel(%arg0: i32, %arg1: memref<16x32xf32, #tpu.memory_space<vmem>>, %arg2: memref<16x32xf32, #tpu.memory_space<vmem>>, %arg3: memref<32x256xbf16, #tpu.memory_space<vmem>>, %arg4: memref<32x256xbf16, #tpu.memory_space<vmem>>, %arg5: memref<1x256xf32, #tpu.memory_space<vmem>>, %arg6: memref<256x128xbf16, #tpu.memory_space<vmem>>, %arg7: memref<1x128xf32, #tpu.memory_space<vmem>>, %arg8: memref<16x128xf32, #tpu.memory_space<vmem>>) attributes {dimension_semantics = [#tpu.dimension_semantics<parallel>], iteration_bounds = array<i64: 2>, scalar_prefetch = 0 : i64, scratch_operands = 0 : i64, tpu.core_type = #tpu.core_type<tc>, window_params = [{transform_indices = @transform_0, window_bounds = array<i64: 16, 32>}, {transform_indices = @transform_1, window_bounds = array<i64: 16, 32>}, {pipeline_mode = #tpu.pipeline_mode<synchronous>, transform_indices = @transform_2, window_bounds = array<i64: 32, 256>}, {pipeline_mode = #tpu.pipeline_mode<synchronous>, transform_indices = @transform_3, window_bounds = array<i64: 32, 256>}, {pipeline_mode = #tpu.pipeline_mode<synchronous>, transform_indices = @transform_4, window_bounds = array<i64: 1, 256>}, {pipeline_mode = #tpu.pipeline_mode<synchronous>, transform_indices = @transform_5, window_bounds = array<i64: 256, 128>}, {pipeline_mode = #tpu.pipeline_mode<synchronous>, transform_indices = @transform_6, window_bounds = array<i64: 1, 128>}, {transform_indices = @transform_7, window_bounds = array<i64: 16, 128>}]} {
    %c0 = arith.constant 0 : index
    %c0_0 = arith.constant 0 : index
    %0 = vector.load %arg1[%c0, %c0_0] : memref<16x32xf32, #tpu.memory_space<vmem>>, vector<16x32xf32>
    %1 = arith.truncf %0 : vector<16x32xf32> to vector<16x32xbf16>
    %c0_1 = arith.constant 0 : index
    %c0_2 = arith.constant 0 : index
    %2 = vector.load %arg3[%c0_1, %c0_2] : memref<32x256xbf16, #tpu.memory_space<vmem>>, vector<32x256xbf16>
    %cst = arith.constant dense<0.000000e+00> : vector<16x256xf32>
    %3 = tpu.matmul %1, %2, %cst {dimension_numbers = #tpu.dot_dimension_numbers<[1], [0], [0], [1], [0, 0, 1, 1], [], []>} : vector<16x32xbf16>, vector<32x256xbf16>, vector<16x256xf32> -> vector<16x256xf32>
    %c0_3 = arith.constant 0 : index
    %c0_4 = arith.constant 0 : index
    %4 = vector.load %arg2[%c0_3, %c0_4] : memref<16x32xf32, #tpu.memory_space<vmem>>, vector<16x32xf32>
    %5 = arith.truncf %4 : vector<16x32xf32> to vector<16x32xbf16>
    %c0_5 = arith.constant 0 : index
    %c0_6 = arith.constant 0 : index
    %6 = vector.load %arg4[%c0_5, %c0_6] : memref<32x256xbf16, #tpu.memory_space<vmem>>, vector<32x256xbf16>
    %cst_7 = arith.constant dense<0.000000e+00> : vector<16x256xf32>
    %7 = tpu.matmul %5, %6, %cst_7 {dimension_numbers = #tpu.dot_dimension_numbers<[1], [0], [0], [1], [0, 0, 1, 1], [], []>} : vector<16x32xbf16>, vector<32x256xbf16>, vector<16x256xf32> -> vector<16x256xf32>
    %8 = arith.addf %3, %7 : vector<16x256xf32>
    %c0_8 = arith.constant 0 : index
    %c0_9 = arith.constant 0 : index
    %9 = vector.load %arg5[%c0_8, %c0_9] : memref<1x256xf32, #tpu.memory_space<vmem>>, vector<1x256xf32>
    %10 = vector.broadcast %9 : vector<1x256xf32> to vector<16x256xf32>
    %11 = arith.addf %8, %10 : vector<16x256xf32>
    %cst_10 = arith.constant 0.00999999977 : f32
    %12 = vector.broadcast %cst_10 : f32 to vector<16x256xf32>
    %13 = arith.mulf %12, %11 : vector<16x256xf32>
    %14 = arith.maximumf %11, %13 : vector<16x256xf32>
    %15 = arith.truncf %14 : vector<16x256xf32> to vector<16x256xbf16>
    %c0_11 = arith.constant 0 : index
    %c0_12 = arith.constant 0 : index
    %16 = vector.load %arg6[%c0_11, %c0_12] : memref<256x128xbf16, #tpu.memory_space<vmem>>, vector<256x128xbf16>
    %cst_13 = arith.constant dense<0.000000e+00> : vector<16x128xf32>
    %17 = tpu.matmul %15, %16, %cst_13 {dimension_numbers = #tpu.dot_dimension_numbers<[1], [0], [0], [1], [0, 0, 1, 1], [], []>} : vector<16x256xbf16>, vector<256x128xbf16>, vector<16x128xf32> -> vector<16x128xf32>
    %c0_14 = arith.constant 0 : index
    %c0_15 = arith.constant 0 : index
    %18 = vector.load %arg7[%c0_14, %c0_15] : memref<1x128xf32, #tpu.memory_space<vmem>>, vector<1x128xf32>
    %19 = vector.broadcast %18 : vector<1x128xf32> to vector<16x128xf32>
    %20 = arith.addf %17, %19 : vector<16x128xf32>
    %c0_16 = arith.constant 0 : index
    %c0_17 = arith.constant 0 : index
    %21 = vector.load %arg8[%c0_16, %c0_17] : memref<16x128xf32, #tpu.memory_space<vmem>>, vector<16x128xf32>
    tpu.vector_store %arg8[%c0_16, %c0_17], %20 {strides = array<i32>} : memref<16x128xf32, #tpu.memory_space<vmem>>, vector<16x128xf32>,
    return
  }
  func.func @transform_0(%arg0: i32) -> (i32, i32) {
    %c0_i32 = arith.constant 0 : i32
    %c0_i32_0 = arith.constant 0 : i32
    return %arg0, %c0_i32 : i32, i32
  }
  func.func @transform_1(%arg0: i32) -> (i32, i32) {
    %c0_i32 = arith.constant 0 : i32
    %c0_i32_0 = arith.constant 0 : i32
    return %arg0, %c0_i32 : i32, i32
  }
  func.func @transform_2(%arg0: i32) -> (i32, i32) {
    %c0_i32 = arith.constant 0 : i32
    %c0_i32_0 = arith.constant 0 : i32
    %c0_i32_1 = arith.constant 0 : i32
    return %c0_i32, %c0_i32_0 : i32, i32
  }
  func.func @transform_3(%arg0: i32) -> (i32, i32) {
    %c0_i32 = arith.constant 0 : i32
    %c0_i32_0 = arith.constant 0 : i32
    %c0_i32_1 = arith.constant 0 : i32
    return %c0_i32, %c0_i32_0 : i32, i32
  }
  func.func @transform_4(%arg0: i32) -> (i32, i32) {
    %c0_i32 = arith.constant 0 : i32
    %c0_i32_0 = arith.constant 0 : i32
    %c0_i32_1 = arith.constant 0 : i32
    return %c0_i32, %c0_i32_0 : i32, i32
  }
  func.func @transform_5(%arg0: i32) -> (i32, i32) {
    %c0_i32 = arith.constant 0 : i32
    %c0_i32_0 = arith.constant 0 : i32
    %c0_i32_1 = arith.constant 0 : i32
    return %c0_i32, %c0_i32_0 : i32, i32
  }
  func.func @transform_6(%arg0: i32) -> (i32, i32) {
    %c0_i32 = arith.constant 0 : i32
    %c0_i32_0 = arith.constant 0 : i32
    %c0_i32_1 = arith.constant 0 : i32
    return %c0_i32, %c0_i32_0 : i32, i32
  }
  func.func @transform_7(%arg0: i32) -> (i32, i32) {
    %c0_i32 = arith.constant 0 : i32
    %c0_i32_0 = arith.constant 0 : i32
    return %arg0, %c0_i32 : i32, i32
  }
}

module attributes {stable_mosaic.version = 11 : i64} {
  func.func @_mlp1_kernel(%arg0: i32, %arg1: memref<8x32xf32, #tpu.memory_space<vmem>>, %arg2: memref<32x256xbf16, #tpu.memory_space<vmem>>, %arg3: memref<1x256xf32, #tpu.memory_space<vmem>>, %arg4: memref<256x128xbf16, #tpu.memory_space<vmem>>, %arg5: memref<1x128xf32, #tpu.memory_space<vmem>>, %arg6: memref<8x128xf32, #tpu.memory_space<vmem>>) attributes {dimension_semantics = [#tpu.dimension_semantics<parallel>], iteration_bounds = array<i64: 2>, scalar_prefetch = 0 : i64, scratch_operands = 0 : i64, tpu.core_type = #tpu.core_type<tc>, window_params = [{transform_indices = @transform_0, window_bounds = array<i64: 8, 32>}, {pipeline_mode = #tpu.pipeline_mode<synchronous>, transform_indices = @transform_1, window_bounds = array<i64: 32, 256>}, {pipeline_mode = #tpu.pipeline_mode<synchronous>, transform_indices = @transform_2, window_bounds = array<i64: 1, 256>}, {pipeline_mode = #tpu.pipeline_mode<synchronous>, transform_indices = @transform_3, window_bounds = array<i64: 256, 128>}, {pipeline_mode = #tpu.pipeline_mode<synchronous>, transform_indices = @transform_4, window_bounds = array<i64: 1, 128>}, {transform_indices = @transform_5, window_bounds = array<i64: 8, 128>}]} {
    %c0 = arith.constant 0 : index
    %c0_0 = arith.constant 0 : index
    %0 = vector.load %arg1[%c0, %c0_0] : memref<8x32xf32, #tpu.memory_space<vmem>>, vector<8x32xf32>
    %1 = arith.truncf %0 : vector<8x32xf32> to vector<8x32xbf16>
    %c0_1 = arith.constant 0 : index
    %c0_2 = arith.constant 0 : index
    %2 = vector.load %arg2[%c0_1, %c0_2] : memref<32x256xbf16, #tpu.memory_space<vmem>>, vector<32x256xbf16>
    %cst = arith.constant dense<0.000000e+00> : vector<8x256xf32>
    %3 = tpu.matmul %1, %2, %cst {dimension_numbers = #tpu.dot_dimension_numbers<[1], [0], [0], [1], [0, 0, 1, 1], [], []>} : vector<8x32xbf16>, vector<32x256xbf16>, vector<8x256xf32> -> vector<8x256xf32>
    %c0_3 = arith.constant 0 : index
    %c0_4 = arith.constant 0 : index
    %4 = vector.load %arg3[%c0_3, %c0_4] : memref<1x256xf32, #tpu.memory_space<vmem>>, vector<1x256xf32>
    %5 = vector.broadcast %4 : vector<1x256xf32> to vector<8x256xf32>
    %6 = arith.addf %3, %5 : vector<8x256xf32>
    %cst_5 = arith.constant 0.00999999977 : f32
    %7 = vector.broadcast %cst_5 : f32 to vector<8x256xf32>
    %8 = arith.mulf %7, %6 : vector<8x256xf32>
    %9 = arith.maximumf %6, %8 : vector<8x256xf32>
    %10 = arith.truncf %9 : vector<8x256xf32> to vector<8x256xbf16>
    %c0_6 = arith.constant 0 : index
    %c0_7 = arith.constant 0 : index
    %11 = vector.load %arg4[%c0_6, %c0_7] : memref<256x128xbf16, #tpu.memory_space<vmem>>, vector<256x128xbf16>
    %cst_8 = arith.constant dense<0.000000e+00> : vector<8x128xf32>
    %12 = tpu.matmul %10, %11, %cst_8 {dimension_numbers = #tpu.dot_dimension_numbers<[1], [0], [0], [1], [0, 0, 1, 1], [], []>} : vector<8x256xbf16>, vector<256x128xbf16>, vector<8x128xf32> -> vector<8x128xf32>
    %c0_9 = arith.constant 0 : index
    %c0_10 = arith.constant 0 : index
    %13 = vector.load %arg5[%c0_9, %c0_10] : memref<1x128xf32, #tpu.memory_space<vmem>>, vector<1x128xf32>
    %14 = vector.broadcast %13 : vector<1x128xf32> to vector<8x128xf32>
    %15 = arith.addf %12, %14 : vector<8x128xf32>
    %c0_11 = arith.constant 0 : index
    %c0_12 = arith.constant 0 : index
    %16 = vector.load %arg6[%c0_11, %c0_12] : memref<8x128xf32, #tpu.memory_space<vmem>>, vector<8x128xf32>
    tpu.vector_store %arg6[%c0_11, %c0_12], %15 {strides = array<i32>} : memref<8x128xf32, #tpu.memory_space<vmem>>, vector<8x128xf32>,
    return
  }
  func.func @transform_0(%arg0: i32) -> (i32, i32) {
    %c0_i32 = arith.constant 0 : i32
    %c0_i32_0 = arith.constant 0 : i32
    return %arg0, %c0_i32 : i32, i32
  }
  func.func @transform_1(%arg0: i32) -> (i32, i32) {
    %c0_i32 = arith.constant 0 : i32
    %c0_i32_0 = arith.constant 0 : i32
    %c0_i32_1 = arith.constant 0 : i32
    return %c0_i32, %c0_i32_0 : i32, i32
  }
  func.func @transform_2(%arg0: i32) -> (i32, i32) {
    %c0_i32 = arith.constant 0 : i32
    %c0_i32_0 = arith.constant 0 : i32
    %c0_i32_1 = arith.constant 0 : i32
    return %c0_i32, %c0_i32_0 : i32, i32
  }
  func.func @transform_3(%arg0: i32) -> (i32, i32) {
    %c0_i32 = arith.constant 0 : i32
    %c0_i32_0 = arith.constant 0 : i32
    %c0_i32_1 = arith.constant 0 : i32
    return %c0_i32, %c0_i32_0 : i32, i32
  }
  func.func @transform_4(%arg0: i32) -> (i32, i32) {
    %c0_i32 = arith.constant 0 : i32
    %c0_i32_0 = arith.constant 0 : i32
    %c0_i32_1 = arith.constant 0 : i32
    return %c0_i32, %c0_i32_0 : i32, i32
  }
  func.func @transform_5(%arg0: i32) -> (i32, i32) {
    %c0_i32 = arith.constant 0 : i32
    %c0_i32_0 = arith.constant 0 : i32
    return %arg0, %c0_i32 : i32, i32
  }
}

</mosaic_0001>

<llo_original>
// kernel: descriptor_network_forward.4
$region0: #{descriptor_network_forward.4}
  #allocation0 [shape = 'u32[]', space=smem, size = 0x4, offset = 0x4, fixed_abs, tag = 'smem constant byte address 0x4 - core index']
  #allocation1 [shape = 'u32[144,128]{1,0:T(1,128)}', space=vmem, size = 0x12000, scoped, tag = 'internal scratch']
  %s0 = inlined_call_operand.vmem [shape: f32[10,17], index: 0, kind: input, shape index: {}]
  %s1 = inlined_call_operand.vmem [shape: f32[17,32], index: 1, kind: input, shape index: {}]
  %s2 = inlined_call_operand.vmem [shape: f32[1,32], index: 2, kind: input, shape index: {}]
  %s3 = inlined_call_operand.vmem [shape: f32[10,32], index: 3, kind: output, shape index: {}]
  %s4 = sld [smem:[#allocation0]]
  $region45: #{descriptor_network_forward.4} parent=0
    _
  %s6 = ssub.s32 1, %s4
  %s7 = scalar_select 0, %s6, %s4
  loop: start=0, step=1, limit=4
  $region2: #{descriptor_network_forward.4} parent=0 // loop_pre_header
    _
  $region3: #{descriptor_network_forward.4} parent=0 // loop_header
    %s9 = sphi 0, %s13
    %p10 = scmp.ge.s32.totalorder %s9, 4
    %s19 = sphi 0, %s21
    %s22 = sphi 0, %s19
    %s23 = sphi 0, %s22
    %s39 = sphi 0, %s23
    %s43 = sphi 0, %s43
    %s45 = sphi 0, %s43
    %s46 = sphi 0, %s45
    %s60 = sphi 0, %s46
    %s64 = sphi 0, %s64
    %s66 = sphi 0, %s64
    %s67 = sphi 0, %s66
    %s81 = sphi 0, %s67
    %s87 = sphi 0, %s89
    %s90 = sphi 0, %s87
    %s91 = sphi 0, %s90
    %s107 = sphi 0, %s91
  $region4: #{descriptor_network_forward.4} parent=0 // loop_header_branch
    %12 = sbr.rel (%p10) target = $region8
  $region5: #{descriptor_network_forward.4} parent=0 // loop_body
    %s14 = ssub.s32 %s9, 1
    %s15 = ssub.s32 %s9, 2
    %s16 = sadd.s32 %s9, 1
    %s17 = ssub.s32 %s9, %s16
    %p18 = scmp.eq.s32.totalorder %s17, 0
    %s20 = sadd.s32 %s19, 1
    %s21 = scalar_select %p18, %s19, %s20
    %p24 = pneg %p18
    %p25 = scmp.eq.s32.totalorder %s9, 1
    %p26 = por %p24, %p25
    %p27 = scmp.ne.s32.totalorder %s19, %s22
    %p28 = scmp.eq.s32.totalorder %s9, 0
    %p29 = por %p27, %p28
    %p30 = scmp.ne.s32.totalorder %s19, %s22
    %p31 = scmp.eq.s32.totalorder %s14, 1
    %p32 = por %p30, %p31
    %p33 = scmp.ne.s32.totalorder %s22, %s23
    %p34 = scmp.eq.s32.totalorder %s14, 0
    %p35 = por %p33, %p34
    %p36 = scmp.ne.s32.totalorder %s22, %s23
    %p37 = scmp.eq.s32.totalorder %s15, 1
    %p38 = por %p36, %p37
    %p40 = scmp.ne.s32.totalorder %s23, %s39
    %p41 = scmp.eq.s32.totalorder %s15, 0
    %p42 = por %p40, %p41
    %s44 = sadd.s32 %s43, 1
    %p47 = scmp.eq.s32.totalorder %s9, 1
    %p48 = scmp.ne.s32.totalorder %s43, %s45
    %p49 = scmp.eq.s32.totalorder %s9, 0
    %p50 = por %p48, %p49
    %p51 = scmp.ne.s32.totalorder %s43, %s45
    %p52 = scmp.eq.s32.totalorder %s14, 1
    %p53 = por %p51, %p52
    %p54 = scmp.ne.s32.totalorder %s45, %s46
    %p55 = scmp.eq.s32.totalorder %s14, 0
    %p56 = por %p54, %p55
    %p57 = scmp.ne.s32.totalorder %s45, %s46
    %p58 = scmp.eq.s32.totalorder %s15, 1
    %p59 = por %p57, %p58
    %p61 = scmp.ne.s32.totalorder %s46, %s60
    %p62 = scmp.eq.s32.totalorder %s15, 0
    %p63 = por %p61, %p62
    %s65 = sadd.s32 %s64, 1
    %p68 = scmp.eq.s32.totalorder %s9, 1
    %p69 = scmp.ne.s32.totalorder %s64, %s66
    %p70 = scmp.eq.s32.totalorder %s9, 0
    %p71 = por %p69, %p70
    %p72 = scmp.ne.s32.totalorder %s64, %s66
    %p73 = scmp.eq.s32.totalorder %s14, 1
    %p74 = por %p72, %p73
    %p75 = scmp.ne.s32.totalorder %s66, %s67
    %p76 = scmp.eq.s32.totalorder %s14, 0
    %p77 = por %p75, %p76
    %p78 = scmp.ne.s32.totalorder %s66, %s67
    %p79 = scmp.eq.s32.totalorder %s15, 1
    %p80 = por %p78, %p79
    %p82 = scmp.ne.s32.totalorder %s67, %s81
    %p83 = scmp.eq.s32.totalorder %s15, 0
    %p84 = por %p82, %p83
    %s85 = ssub.s32 %s9, %s16
    %p86 = scmp.eq.s32.totalorder %s85, 0
    %s88 = sadd.s32 %s87, 1
    %s89 = scalar_select %p86, %s87, %s88
    %p92 = pneg %p86
    %p93 = scmp.eq.s32.totalorder %s9, 1
    %p94 = por %p92, %p93
    %p95 = scmp.ne.s32.totalorder %s87, %s90
    %p96 = scmp.eq.s32.totalorder %s9, 0
    %p97 = por %p95, %p96
    %p98 = scmp.ne.s32.totalorder %s87, %s90
    %p99 = scmp.eq.s32.totalorder %s14, 1
    %p100 = por %p98, %p99
    %p101 = scmp.ne.s32.totalorder %s90, %s91
    %p102 = scmp.eq.s32.totalorder %s14, 0
    %p103 = por %p101, %p102
    %p104 = scmp.ne.s32.totalorder %s90, %s91
    %p105 = scmp.eq.s32.totalorder %s15, 1
    %p106 = por %p104, %p105
    %p108 = scmp.ne.s32.totalorder %s91, %s107
    %p109 = scmp.eq.s32.totalorder %s15, 0
    %p110 = por %p108, %p109
    %p111 = scmp.le.s32.totalorder 1, %s9
    %p112 = scmp.lt.s32.totalorder %s9, 3
    %p113 = pnand %p111, %p112
    %p114 = pneg %p113
    // Predicated region
    $region9: #{descriptor_network_forward.4} parent=5 // pred_check
      _
    $region10: #{descriptor_network_forward.4} parent=5 // pred_check_branch
      %116 = sbr.rel (%p113) target = $region12
    $region11: #{descriptor_network_forward.4} parent=5 // pred_region
      %s117 = ssub.s32 %s9, 1
      // Predicated region
      $region13: #{descriptor_network_forward.4} parent=11 // pred_check
        %p118 = pneg %p56
      $region14: #{descriptor_network_forward.4} parent=11 // pred_check_branch
        %120 = sbr.rel (%p118) target = $region16
      $region15: #{descriptor_network_forward.4} parent=11 // pred_region
        _
      $region16: #{descriptor_network_forward.4} parent=11 // pred_fallthru
        _
      // Predicated region
      $region17: #{descriptor_network_forward.4} parent=11 // pred_check
        %p121 = pneg %p77
      $region18: #{descriptor_network_forward.4} parent=11 // pred_check_branch
        %123 = sbr.rel (%p121) target = $region20
      $region19: #{descriptor_network_forward.4} parent=11 // pred_region
        _
      $region20: #{descriptor_network_forward.4} parent=11 // pred_fallthru
        _
    $region12: #{descriptor_network_forward.4} parent=5 // pred_fallthru
      _
    %p124 = scmp.lt.s32.totalorder %s9, 2
    // Predicated region
    $region21: #{descriptor_network_forward.4} parent=5 // pred_check
      %p125 = pneg %p124
    $region22: #{descriptor_network_forward.4} parent=5 // pred_check_branch
      %127 = sbr.rel (%p125) target = $region24
    $region23: #{descriptor_network_forward.4} parent=5 // pred_region
      // Predicated region
      $region25: #{descriptor_network_forward.4} parent=23 // pred_check
        %p128 = pneg %p29
      $region26: #{descriptor_network_forward.4} parent=23 // pred_check_branch
        %130 = sbr.rel (%p128) target = $region28
      $region27: #{descriptor_network_forward.4} parent=23 // pred_region
        %p131 = scmp.lt.s32.totalorder %s9, 1
        %s132 = scalar_select %p131, %s9, 1
        %s133 = smul.addr %s132, 8
        %s134 = scalar_lea.vmem %s0, %s133
      $region28: #{descriptor_network_forward.4} parent=23 // pred_fallthru
        _
    $region24: #{descriptor_network_forward.4} parent=5 // pred_fallthru
      _
    %p135 = scmp.le.s32.totalorder 1, %s9
    %p136 = scmp.lt.s32.totalorder %s9, 3
    %p137 = pnand %p135, %p136
    %p138 = pneg %p137
    // Predicated region
    $region29: #{descriptor_network_forward.4} parent=5 // pred_check
      _
    $region30: #{descriptor_network_forward.4} parent=5 // pred_check_branch
      %140 = sbr.rel (%p137) target = $region32
    $region31: #{descriptor_network_forward.4} parent=5 // pred_region
      %s141 = ssub.s32 %s9, 1
      %p142 = scmp.lt.s32.totalorder %s14, 1
      %s143 = scalar_select %p142, %s14, 1
      %s144 = smul.addr %s143, 8
      %s145 = scalar_lea.vmem %s0, %s144
      %p146 = pneg %p35
      %p147 = pneg %p32
      %p148 = pneg %p56
      %p149 = pneg %p53
      %p150 = pneg %p77
      %p151 = pneg %p74
      %p152 = pneg %p103
      %p153 = pneg %p100
      %p154 = scmp.lt.s32.totalorder %s14, 1
      %s155 = scalar_select %p154, %s14, 1
      %s156 = smul.addr %s155, 8
      %s157 = scalar_lea.vmem %s3, %s156
      %p158 = scmp.lt.s32.totalorder %s14, 1
      %s159 = scalar_select %p158, %s14, 1
      %s160 = smul.addr %s159, 8
      %s161 = scalar_lea.vmem %s0, %s160
      %p162 = scmp.lt.s32.totalorder %s14, 1
      %s163 = scalar_select %p162, %s14, 1
      %s164 = smul.addr %s163, 8
      %s165 = scalar_lea.vmem %s3, %s164
      %v166 = vld [vmem:[%s161] sm:$0xff]
      %v167 = vld [vmem:[%s1] sm:$0xff]
      %v168 = vld [vmem:[%s1 + $0x8] sm:$0xff]
      %v169 = vld [vmem:[%s1 + $0x10] sm:$0x1]
      %v170 = vld [vmem:[%s2] sm:$0x1]
      %v172 = vlaneseq
      %v173 = vshrl.u32 %v172, 7
      %v174 = vsub.s32 0, %v173
      %v175 = vrot.slane %v170, %v174
      %vm177 = vcmask 138240
      %v179 = vsel %vm177, %v166, 0
      %vm181 = vcmask 1040384
      %v183 = vsel %vm181, %v169, 0
      %185 = vmatprep.subr.mxu0 0.0
      %186 = vmatpush1.msra.mxu0 %v167
      %187 = vmatprep.subr.mxu0 0.0
      %188 = vmatpush1.msra.mxu0 %v168
      %189 = vmatprep.subr.mxu0 0.0
      %190 = vmatpush1.msra.mxu0 %v183
      %191 = vmatprep.subr.mxu0 0.0
      %192 = vmatpush1.msra.mxu0 0.0
      %193 = vmatprep.subr.mxu0 0.0
      %194 = vmatpush1.msra.mxu0 0.0
      %195 = vmatprep.subr.mxu0 0.0
      %196 = vmatpush1.msra.mxu0 0.0
      %197 = vmatprep.subr.mxu0 0.0
      %198 = vmatpush1.msra.mxu0 0.0
      %199 = vmatprep.subr.mxu0 0.0
      %200 = vmatpush1.msra.mxu0 0.0
      %201 = vmatprep.subr.mxu0 0.0
      %202 = vmatpush1.msra.mxu0 0.0
      %203 = vmatprep.subr.mxu0 0.0
      %204 = vmatpush1.msra.mxu0 0.0
      %205 = vmatprep.subr.mxu0 0.0
      %206 = vmatpush1.msra.mxu0 0.0
      %207 = vmatprep.subr.mxu0 0.0
      %208 = vmatpush1.msra.mxu0 0.0
      %209 = vmatprep.subr.mxu0 0.0
      %210 = vmatpush1.msra.mxu0 0.0
      %211 = vmatprep.subr.mxu0 0.0
      %212 = vmatpush1.msra.mxu0 0.0
      %213 = vmatprep.subr.mxu0 0.0
      %214 = vmatpush1.msra.mxu0 0.0
      %215 = vmatprep.subr.mxu0 0.0
      %216 = vmatpush1.msra.mxu0 0.0
      %217 = vmatprep.subr.mxu0 0.0
      %218 = vmatpush1.msra.mxu0 0.0
      %219 = vmatprep.subr.mxu0 0.0
      %220 = vmatpush1.msra.mxu0 0.0
      %221 = vmatprep.subr.mxu0 0.0
      %222 = vmatpush1.msra.mxu0 0.0
      %223 = vmatprep.subr.mxu0 0.0
      %224 = vmatpush1.msra.mxu0 0.0
      %225 = vmatprep.subr.mxu0 0.0
      %226 = vmatpush1.msra.mxu0 0.0
      %227 = vmatprep.subr.mxu0 0.0
      %228 = vmatpush1.msra.mxu0 0.0
      %229 = vmatprep.subr.mxu0 0.0
      %230 = vmatpush1.msra.mxu0 0.0
      %231 = vmatprep.subr.mxu0 0.0
      %232 = vmatpush1.msra.mxu0 0.0
      %233 = vmatprep.subr.mxu0 0.0
      %234 = vmatpush1.msra.mxu0 0.0
      %235 = vmatprep.subr.mxu0 0.0
      %236 = vmatpush1.msra.mxu0 0.0
      %237 = vmatprep.subr.mxu0 0.0
      %238 = vmatpush1.msra.mxu0 0.0
      %239 = vmatprep.subr.mxu0 0.0
      %240 = vmatpush1.msra.mxu0 0.0
      %241 = vmatprep.subr.mxu0 0.0
      %242 = vmatpush1.msra.mxu0 0.0
      %243 = vmatprep.subr.mxu0 0.0
      %244 = vmatpush1.msra.mxu0 0.0
      %245 = vmatprep.subr.mxu0 0.0
      %246 = vmatpush1.msra.mxu0 0.0
      %247 = vmatprep.subr.mxu0 0.0
      %248 = vmatpush1.msra.mxu0 0.0
      %249 = vmatprep.mubr.f32.mxu0 0.0
      %250 = vmatmul.mubr.f32.gmra.mrb[0].mxu0 %v179
      %v251 = vpop.f32.mrb[0].mxu0
      %v252 = vadd.f32 %v175, %v251
      %v253 = vpop.f32.mrb[0].mxu0
      %254 = vdwg.mxu0
      %vm255 = vcmask 261120
      %256 = vst.msk [vmem:[%s165] sm:$0xff] %vm255, %v252
      %p257 = scmp.lt.s32.totalorder %s14, 1
      %s258 = scalar_select %p257, %s14, 1
      %s259 = smul.addr %s258, 8
      %s260 = scalar_lea.vmem %s3, %s259
      // Predicated region
      $region33: #{descriptor_network_forward.4} parent=31 // pred_check
        %p261 = pneg %p100
      $region34: #{descriptor_network_forward.4} parent=31 // pred_check_branch
        %263 = sbr.rel (%p261) target = $region36
      $region35: #{descriptor_network_forward.4} parent=31 // pred_region
        _
      $region36: #{descriptor_network_forward.4} parent=31 // pred_fallthru
        _
    $region32: #{descriptor_network_forward.4} parent=5 // pred_fallthru
      _
    %p264 = scmp.le.s32.totalorder 2, %s9
    // Predicated region
    $region37: #{descriptor_network_forward.4} parent=5 // pred_check
      %p265 = pneg %p264
    $region38: #{descriptor_network_forward.4} parent=5 // pred_check_branch
      %267 = sbr.rel (%p265) target = $region40
    $region39: #{descriptor_network_forward.4} parent=5 // pred_region
      %s268 = ssub.s32 %s9, 2
      // Predicated region
      $region41: #{descriptor_network_forward.4} parent=39 // pred_check
        %p269 = pneg %p106
      $region42: #{descriptor_network_forward.4} parent=39 // pred_check_branch
        %271 = sbr.rel (%p269) target = $region44
      $region43: #{descriptor_network_forward.4} parent=39 // pred_region
        %p272 = scmp.lt.s32.totalorder %s15, 1
        %s273 = scalar_select %p272, %s15, 1
        %s274 = smul.addr %s273, 8
        %s275 = scalar_lea.vmem %s3, %s274
      $region44: #{descriptor_network_forward.4} parent=39 // pred_fallthru
        _
    $region40: #{descriptor_network_forward.4} parent=5 // pred_fallthru
      _
  $region6: #{descriptor_network_forward.4} parent=0 // loop_footer
    %s13 = sadd.s32 1, %s9
  $region7: #{descriptor_network_forward.4} parent=0 // loop_footer_branch
    %8 = sbr.rel target = $region3
  $region8: #{descriptor_network_forward.4} parent=0 // loop_exit
    _

// kernel: descriptor_network_forward.5
$region0: #{descriptor_network_forward.5}
  #allocation0 [shape = 'u32[]', space=smem, size = 0x4, offset = 0x4, fixed_abs, tag = 'smem constant byte address 0x4 - core index']
  #allocation1 [shape = 'u32[144,128]{1,0:T(1,128)}', space=vmem, size = 0x12000, scoped, tag = 'internal scratch']
  %s0 = inlined_call_operand.vmem [shape: f32[30,32], index: 0, kind: input, shape index: {}]
  %s1 = inlined_call_operand.vmem [shape: f32[30,32], index: 1, kind: input, shape index: {}]
  %s2 = inlined_call_operand.vmem [shape: bf16[32,256], index: 2, kind: input, shape index: {}]
  %s3 = inlined_call_operand.vmem [shape: bf16[32,256], index: 3, kind: input, shape index: {}]
  %s4 = inlined_call_operand.vmem [shape: f32[1,256], index: 4, kind: input, shape index: {}]
  %s5 = inlined_call_operand.vmem [shape: bf16[256,128], index: 5, kind: input, shape index: {}]
  %s6 = inlined_call_operand.vmem [shape: f32[1,128], index: 6, kind: input, shape index: {}]
  %s7 = inlined_call_operand.vmem [shape: f32[30,128], index: 7, kind: output, shape index: {}]
  %s8 = sld [smem:[#allocation0]]
  $region61: #{descriptor_network_forward.5} parent=0
    _
  %s10 = ssub.s32 1, %s8
  %s11 = scalar_select 0, %s10, %s8
  loop: start=0, step=1, limit=4
  $region2: #{descriptor_network_forward.5} parent=0 // loop_pre_header
    _
  $region3: #{descriptor_network_forward.5} parent=0 // loop_header
    %s13 = sphi 0, %s17
    %p14 = scmp.ge.s32.totalorder %s13, 4
    %s23 = sphi 0, %s25
    %s26 = sphi 0, %s23
    %s27 = sphi 0, %s26
    %s43 = sphi 0, %s27
    %s49 = sphi 0, %s51
    %s52 = sphi 0, %s49
    %s53 = sphi 0, %s52
    %s69 = sphi 0, %s53
    %s73 = sphi 0, %s73
    %s75 = sphi 0, %s73
    %s76 = sphi 0, %s75
    %s90 = sphi 0, %s76
    %s94 = sphi 0, %s94
    %s96 = sphi 0, %s94
    %s97 = sphi 0, %s96
    %s111 = sphi 0, %s97
    %s115 = sphi 0, %s115
    %s117 = sphi 0, %s115
    %s118 = sphi 0, %s117
    %s132 = sphi 0, %s118
    %s136 = sphi 0, %s136
    %s138 = sphi 0, %s136
    %s139 = sphi 0, %s138
    %s153 = sphi 0, %s139
    %s157 = sphi 0, %s157
    %s159 = sphi 0, %s157
    %s160 = sphi 0, %s159
    %s174 = sphi 0, %s160
    %s180 = sphi 0, %s182
    %s183 = sphi 0, %s180
    %s184 = sphi 0, %s183
    %s200 = sphi 0, %s184
  $region4: #{descriptor_network_forward.5} parent=0 // loop_header_branch
    %16 = sbr.rel (%p14) target = $region8
  $region5: #{descriptor_network_forward.5} parent=0 // loop_body
    %s18 = ssub.s32 %s13, 1
    %s19 = ssub.s32 %s13, 2
    %s20 = sadd.s32 %s13, 1
    %s21 = ssub.s32 %s13, %s20
    %p22 = scmp.eq.s32.totalorder %s21, 0
    %s24 = sadd.s32 %s23, 1
    %s25 = scalar_select %p22, %s23, %s24
    %p28 = pneg %p22
    %p29 = scmp.eq.s32.totalorder %s13, 1
    %p30 = por %p28, %p29
    %p31 = scmp.ne.s32.totalorder %s23, %s26
    %p32 = scmp.eq.s32.totalorder %s13, 0
    %p33 = por %p31, %p32
    %p34 = scmp.ne.s32.totalorder %s23, %s26
    %p35 = scmp.eq.s32.totalorder %s18, 1
    %p36 = por %p34, %p35
    %p37 = scmp.ne.s32.totalorder %s26, %s27
    %p38 = scmp.eq.s32.totalorder %s18, 0
    %p39 = por %p37, %p38
    %p40 = scmp.ne.s32.totalorder %s26, %s27
    %p41 = scmp.eq.s32.totalorder %s19, 1
    %p42 = por %p40, %p41
    %p44 = scmp.ne.s32.totalorder %s27, %s43
    %p45 = scmp.eq.s32.totalorder %s19, 0
    %p46 = por %p44, %p45
    %s47 = ssub.s32 %s13, %s20
    %p48 = scmp.eq.s32.totalorder %s47, 0
    %s50 = sadd.s32 %s49, 1
    %s51 = scalar_select %p48, %s49, %s50
    %p54 = pneg %p48
    %p55 = scmp.eq.s32.totalorder %s13, 1
    %p56 = por %p54, %p55
    %p57 = scmp.ne.s32.totalorder %s49, %s52
    %p58 = scmp.eq.s32.totalorder %s13, 0
    %p59 = por %p57, %p58
    %p60 = scmp.ne.s32.totalorder %s49, %s52
    %p61 = scmp.eq.s32.totalorder %s18, 1
    %p62 = por %p60, %p61
    %p63 = scmp.ne.s32.totalorder %s52, %s53
    %p64 = scmp.eq.s32.totalorder %s18, 0
    %p65 = por %p63, %p64
    %p66 = scmp.ne.s32.totalorder %s52, %s53
    %p67 = scmp.eq.s32.totalorder %s19, 1
    %p68 = por %p66, %p67
    %p70 = scmp.ne.s32.totalorder %s53, %s69
    %p71 = scmp.eq.s32.totalorder %s19, 0
    %p72 = por %p70, %p71
    %s74 = sadd.s32 %s73, 1
    %p77 = scmp.eq.s32.totalorder %s13, 1
    %p78 = scmp.ne.s32.totalorder %s73, %s75
    %p79 = scmp.eq.s32.totalorder %s13, 0
    %p80 = por %p78, %p79
    %p81 = scmp.ne.s32.totalorder %s73, %s75
    %p82 = scmp.eq.s32.totalorder %s18, 1
    %p83 = por %p81, %p82
    %p84 = scmp.ne.s32.totalorder %s75, %s76
    %p85 = scmp.eq.s32.totalorder %s18, 0
    %p86 = por %p84, %p85
    %p87 = scmp.ne.s32.totalorder %s75, %s76
    %p88 = scmp.eq.s32.totalorder %s19, 1
    %p89 = por %p87, %p88
    %p91 = scmp.ne.s32.totalorder %s76, %s90
    %p92 = scmp.eq.s32.totalorder %s19, 0
    %p93 = por %p91, %p92
    %s95 = sadd.s32 %s94, 1
    %p98 = scmp.eq.s32.totalorder %s13, 1
    %p99 = scmp.ne.s32.totalorder %s94, %s96
    %p100 = scmp.eq.s32.totalorder %s13, 0
    %p101 = por %p99, %p100
    %p102 = scmp.ne.s32.totalorder %s94, %s96
    %p103 = scmp.eq.s32.totalorder %s18, 1
    %p104 = por %p102, %p103
    %p105 = scmp.ne.s32.totalorder %s96, %s97
    %p106 = scmp.eq.s32.totalorder %s18, 0
    %p107 = por %p105, %p106
    %p108 = scmp.ne.s32.totalorder %s96, %s97
    %p109 = scmp.eq.s32.totalorder %s19, 1
    %p110 = por %p108, %p109
    %p112 = scmp.ne.s32.totalorder %s97, %s111
    %p113 = scmp.eq.s32.totalorder %s19, 0
    %p114 = por %p112, %p113
    %s116 = sadd.s32 %s115, 1
    %p119 = scmp.eq.s32.totalorder %s13, 1
    %p120 = scmp.ne.s32.totalorder %s115, %s117
    %p121 = scmp.eq.s32.totalorder %s13, 0
    %p122 = por %p120, %p121
    %p123 = scmp.ne.s32.totalorder %s115, %s117
    %p124 = scmp.eq.s32.totalorder %s18, 1
    %p125 = por %p123, %p124
    %p126 = scmp.ne.s32.totalorder %s117, %s118
    %p127 = scmp.eq.s32.totalorder %s18, 0
    %p128 = por %p126, %p127
    %p129 = scmp.ne.s32.totalorder %s117, %s118
    %p130 = scmp.eq.s32.totalorder %s19, 1
    %p131 = por %p129, %p130
    %p133 = scmp.ne.s32.totalorder %s118, %s132
    %p134 = scmp.eq.s32.totalorder %s19, 0
    %p135 = por %p133, %p134
    %s137 = sadd.s32 %s136, 1
    %p140 = scmp.eq.s32.totalorder %s13, 1
    %p141 = scmp.ne.s32.totalorder %s136, %s138
    %p142 = scmp.eq.s32.totalorder %s13, 0
    %p143 = por %p141, %p142
    %p144 = scmp.ne.s32.totalorder %s136, %s138
    %p145 = scmp.eq.s32.totalorder %s18, 1
    %p146 = por %p144, %p145
    %p147 = scmp.ne.s32.totalorder %s138, %s139
    %p148 = scmp.eq.s32.totalorder %s18, 0
    %p149 = por %p147, %p148
    %p150 = scmp.ne.s32.totalorder %s138, %s139
    %p151 = scmp.eq.s32.totalorder %s19, 1
    %p152 = por %p150, %p151
    %p154 = scmp.ne.s32.totalorder %s139, %s153
    %p155 = scmp.eq.s32.totalorder %s19, 0
    %p156 = por %p154, %p155
    %s158 = sadd.s32 %s157, 1
    %p161 = scmp.eq.s32.totalorder %s13, 1
    %p162 = scmp.ne.s32.totalorder %s157, %s159
    %p163 = scmp.eq.s32.totalorder %s13, 0
    %p164 = por %p162, %p163
    %p165 = scmp.ne.s32.totalorder %s157, %s159
    %p166 = scmp.eq.s32.totalorder %s18, 1
    %p167 = por %p165, %p166
    %p168 = scmp.ne.s32.totalorder %s159, %s160
    %p169 = scmp.eq.s32.totalorder %s18, 0
    %p170 = por %p168, %p169
    %p171 = scmp.ne.s32.totalorder %s159, %s160
    %p172 = scmp.eq.s32.totalorder %s19, 1
    %p173 = por %p171, %p172
    %p175 = scmp.ne.s32.totalorder %s160, %s174
    %p176 = scmp.eq.s32.totalorder %s19, 0
    %p177 = por %p175, %p176
    %s178 = ssub.s32 %s13, %s20
    %p179 = scmp.eq.s32.totalorder %s178, 0
    %s181 = sadd.s32 %s180, 1
    %s182 = scalar_select %p179, %s180, %s181
    %p185 = pneg %p179
    %p186 = scmp.eq.s32.totalorder %s13, 1
    %p187 = por %p185, %p186
    %p188 = scmp.ne.s32.totalorder %s180, %s183
    %p189 = scmp.eq.s32.totalorder %s13, 0
    %p190 = por %p188, %p189
    %p191 = scmp.ne.s32.totalorder %s180, %s183
    %p192 = scmp.eq.s32.totalorder %s18, 1
    %p193 = por %p191, %p192
    %p194 = scmp.ne.s32.totalorder %s183, %s184
    %p195 = scmp.eq.s32.totalorder %s18, 0
    %p196 = por %p194, %p195
    %p197 = scmp.ne.s32.totalorder %s183, %s184
    %p198 = scmp.eq.s32.totalorder %s19, 1
    %p199 = por %p197, %p198
    %p201 = scmp.ne.s32.totalorder %s184, %s200
    %p202 = scmp.eq.s32.totalorder %s19, 0
    %p203 = por %p201, %p202
    %p204 = scmp.le.s32.totalorder 1, %s13
    %p205 = scmp.lt.s32.totalorder %s13, 3
    %p206 = pnand %p204, %p205
    %p207 = pneg %p206
    // Predicated region
    $region9: #{descriptor_network_forward.5} parent=5 // pred_check
      _
    $region10: #{descriptor_network_forward.5} parent=5 // pred_check_branch
      %209 = sbr.rel (%p206) target = $region12
    $region11: #{descriptor_network_forward.5} parent=5 // pred_region
      %s210 = ssub.s32 %s13, 1
      // Predicated region
      $region13: #{descriptor_network_forward.5} parent=11 // pred_check
        %p211 = pneg %p86
      $region14: #{descriptor_network_forward.5} parent=11 // pred_check_branch
        %213 = sbr.rel (%p211) target = $region16
      $region15: #{descriptor_network_forward.5} parent=11 // pred_region
        _
      $region16: #{descriptor_network_forward.5} parent=11 // pred_fallthru
        _
      // Predicated region
      $region17: #{descriptor_network_forward.5} parent=11 // pred_check
        %p214 = pneg %p107
      $region18: #{descriptor_network_forward.5} parent=11 // pred_check_branch
        %216 = sbr.rel (%p214) target = $region20
      $region19: #{descriptor_network_forward.5} parent=11 // pred_region
        _
      $region20: #{descriptor_network_forward.5} parent=11 // pred_fallthru
        _
      // Predicated region
      $region21: #{descriptor_network_forward.5} parent=11 // pred_check
        %p217 = pneg %p128
      $region22: #{descriptor_network_forward.5} parent=11 // pred_check_branch
        %219 = sbr.rel (%p217) target = $region24
      $region23: #{descriptor_network_forward.5} parent=11 // pred_region
        _
      $region24: #{descriptor_network_forward.5} parent=11 // pred_fallthru
        _
      // Predicated region
      $region25: #{descriptor_network_forward.5} parent=11 // pred_check
        %p220 = pneg %p149
      $region26: #{descriptor_network_forward.5} parent=11 // pred_check_branch
        %222 = sbr.rel (%p220) target = $region28
      $region27: #{descriptor_network_forward.5} parent=11 // pred_region
        _
      $region28: #{descriptor_network_forward.5} parent=11 // pred_fallthru
        _
      // Predicated region
      $region29: #{descriptor_network_forward.5} parent=11 // pred_check
        %p223 = pneg %p170
      $region30: #{descriptor_network_forward.5} parent=11 // pred_check_branch
        %225 = sbr.rel (%p223) target = $region32
      $region31: #{descriptor_network_forward.5} parent=11 // pred_region
        _
      $region32: #{descriptor_network_forward.5} parent=11 // pred_fallthru
        _
    $region12: #{descriptor_network_forward.5} parent=5 // pred_fallthru
      _
    %p226 = scmp.lt.s32.totalorder %s13, 2
    // Predicated region
    $region33: #{descriptor_network_forward.5} parent=5 // pred_check
      %p227 = pneg %p226
    $region34: #{descriptor_network_forward.5} parent=5 // pred_check_branch
      %229 = sbr.rel (%p227) target = $region36
    $region35: #{descriptor_network_forward.5} parent=5 // pred_region
      // Predicated region
      $region37: #{descriptor_network_forward.5} parent=35 // pred_check
        %p230 = pneg %p33
      $region38: #{descriptor_network_forward.5} parent=35 // pred_check_branch
        %232 = sbr.rel (%p230) target = $region40
      $region39: #{descriptor_network_forward.5} parent=35 // pred_region
        %s233 = smul.u32 2, %s13
        %p234 = scmp.lt.s32.totalorder %s233, 3
        %s235 = scalar_select %p234, %s233, 3
        %s236 = smul.addr %s235, 8
        %s237 = scalar_lea.vmem %s0, %s236
        %s238 = smul.u32 2, %s13
      $region40: #{descriptor_network_forward.5} parent=35 // pred_fallthru
        _
      // Predicated region
      $region41: #{descriptor_network_forward.5} parent=35 // pred_check
        %p239 = pneg %p59
      $region42: #{descriptor_network_forward.5} parent=35 // pred_check_branch
        %241 = sbr.rel (%p239) target = $region44
      $region43: #{descriptor_network_forward.5} parent=35 // pred_region
        %s242 = smul.u32 2, %s13
        %p243 = scmp.lt.s32.totalorder %s242, 3
        %s244 = scalar_select %p243, %s242, 3
        %s245 = smul.addr %s244, 8
        %s246 = scalar_lea.vmem %s1, %s245
        %s247 = smul.u32 2, %s13
      $region44: #{descriptor_network_forward.5} parent=35 // pred_fallthru
        _
    $region36: #{descriptor_network_forward.5} parent=5 // pred_fallthru
      _
    %p248 = scmp.le.s32.totalorder 1, %s13
    %p249 = scmp.lt.s32.totalorder %s13, 3
    %p250 = pnand %p248, %p249
    %p251 = pneg %p250
    // Predicated region
    $region45: #{descriptor_network_forward.5} parent=5 // pred_check
      _
    $region46: #{descriptor_network_forward.5} parent=5 // pred_check_branch
      %253 = sbr.rel (%p250) target = $region48
    $region47: #{descriptor_network_forward.5} parent=5 // pred_region
      %s254 = ssub.s32 %s13, 1
      %s255 = smul.u32 2, %s18
      %p256 = scmp.lt.s32.totalorder %s255, 3
      %s257 = scalar_select %p256, %s255, 3
      %s258 = smul.addr %s257, 8
      %s259 = scalar_lea.vmem %s0, %s258
      %p260 = pneg %p39
      %p261 = pneg %p36
      %s262 = smul.u32 2, %s18
      %p263 = scmp.lt.s32.totalorder %s262, 3
      %s264 = scalar_select %p263, %s262, 3
      %s265 = smul.addr %s264, 8
      %s266 = scalar_lea.vmem %s1, %s265
      %p267 = pneg %p65
      %p268 = pneg %p62
      %p269 = pneg %p86
      %p270 = pneg %p83
      %p271 = pneg %p107
      %p272 = pneg %p104
      %p273 = pneg %p128
      %p274 = pneg %p125
      %p275 = pneg %p149
      %p276 = pneg %p146
      %p277 = pneg %p170
      %p278 = pneg %p167
      %p279 = pneg %p196
      %p280 = pneg %p193
      %s281 = smul.u32 2, %s18
      %p282 = scmp.lt.s32.totalorder %s281, 3
      %s283 = scalar_select %p282, %s281, 3
      %s284 = smul.addr %s283, 8
      %s285 = scalar_lea.vmem %s7, %s284
      %s286 = smul.u32 2, %s18
      %p287 = scmp.lt.s32.totalorder %s286, 3
      %s288 = scalar_select %p287, %s286, 3
      %s289 = smul.addr %s288, 8
      %s290 = scalar_lea.vmem %s0, %s289
      %s291 = smul.u32 2, %s18
      %s292 = smul.u32 2, %s18
      %p293 = scmp.lt.s32.totalorder %s292, 3
      %s294 = scalar_select %p293, %s292, 3
      %s295 = smul.addr %s294, 8
      %s296 = scalar_lea.vmem %s1, %s295
      %s297 = smul.u32 2, %s18
      %s298 = smul.u32 2, %s18
      %p299 = scmp.lt.s32.totalorder %s298, 3
      %s300 = scalar_select %p299, %s298, 3
      %s301 = smul.addr %s300, 8
      %s302 = scalar_lea.vmem %s7, %s301
      %s303 = smul.u32 2, %s18
      %v305 = vld [vmem:[%s290] sm:$0xff]
      %v306 = vld [vmem:[%s290 + $0x8] sm:$0xff]
      %v307 = vpack.c.bf16 %v306, %v305
      %v308 = vld [vmem:[%s2] sm:$0xff]
      %v309 = vld [vmem:[%s2 + $0x8] sm:$0xff]
      %v310 = vld [vmem:[%s2 + $0x10] sm:$0xff]
      %v311 = vld [vmem:[%s2 + $0x18] sm:$0xff]
      %v312 = vld [vmem:[%s296] sm:$0xff]
      %v313 = vld [vmem:[%s296 + $0x8] sm:$0xff]
      %v314 = vpack.c.bf16 %v313, %v312
      %v315 = vld [vmem:[%s3] sm:$0xff]
      %v316 = vld [vmem:[%s3 + $0x8] sm:$0xff]
      %v317 = vld [vmem:[%s3 + $0x10] sm:$0xff]
      %v318 = vld [vmem:[%s3 + $0x18] sm:$0xff]
      %v323 = vunpack.c.l.b16 %v315
      %v324 = vunpack.c.h.b16 %v315
      %v325 = vunpack.c.l.b16 %v316
      %v326 = vunpack.c.h.b16 %v316
      %v327 = vunpack.c.l.b16 %v317
      %v328 = vunpack.c.h.b16 %v317
      %v329 = vunpack.c.l.b16 %v318
      %v330 = vunpack.c.h.b16 %v318
      %v331 = vpack.c.b16 %v325, %v323
      %v332 = vpack.c.b16 %v326, %v324
      %v333 = vpack.c.b16 %v329, %v327
      %v334 = vpack.c.b16 %v330, %v328
      %vm339 = vcmask 261120
      %v341 = vsel %vm339, %v314, 0
      %343 = vmatprep.subr.bf16.mxu0 %v332
      %344 = vmatpush1.bf16.msra.mxu0 %v331
      %345 = vmatprep.subr.bf16.mxu0 %v334
      %346 = vmatpush1.bf16.msra.mxu0 %v333
      %347 = vmatprep.subr.bf16.mxu0 0
      %348 = vmatpush1.bf16.msra.mxu0 0
      %349 = vmatprep.subr.bf16.mxu0 0
      %350 = vmatpush1.bf16.msra.mxu0 0
      %351 = vmatprep.subr.bf16.mxu0 0
      %352 = vmatpush1.bf16.msra.mxu0 0
      %353 = vmatprep.subr.bf16.mxu0 0
      %354 = vmatpush1.bf16.msra.mxu0 0
      %355 = vmatprep.subr.bf16.mxu0 0
      %356 = vmatpush1.bf16.msra.mxu0 0
      %357 = vmatprep.subr.bf16.mxu0 0
      %358 = vmatpush1.bf16.msra.mxu0 0
      %359 = vmatprep.subr.bf16.mxu0 0
      %360 = vmatpush1.bf16.msra.mxu0 0
      %361 = vmatprep.subr.bf16.mxu0 0
      %362 = vmatpush1.bf16.msra.mxu0 0
      %363 = vmatprep.subr.bf16.mxu0 0
      %364 = vmatpush1.bf16.msra.mxu0 0
      %365 = vmatprep.subr.bf16.mxu0 0
      %366 = vmatpush1.bf16.msra.mxu0 0
      %367 = vmatprep.subr.bf16.mxu0 0
      %368 = vmatpush1.bf16.msra.mxu0 0
      %369 = vmatprep.subr.bf16.mxu0 0
      %370 = vmatpush1.bf16.msra.mxu0 0
      %371 = vmatprep.subr.bf16.mxu0 0
      %372 = vmatpush1.bf16.msra.mxu0 0
      %373 = vmatprep.subr.bf16.mxu0 0
      %374 = vmatpush1.bf16.msra.mxu0 0
      %375 = vmatprep.mubr.bf16.mxu0 0
      %376 = vmatmul.mubr.bf16.gmra.mrb[0].mxu0 %v341
      %v377 = vpop.f32.mrb[0].mxu0
      %v378 = vadd.f32 0.0, %v377
      %v379 = vpop.f32.mrb[0].mxu0
      %v380 = vadd.f32 0.0, %v379
      %v381 = vpop.f32.mrb[0].mxu0
      %v382 = vadd.f32 0.0, %v381
      %v383 = vpop.f32.mrb[0].mxu0
      %v384 = vadd.f32 0.0, %v383
      %385 = vdwg.mxu0
      %v390 = vunpack.c.l.b16 %v308
      %v391 = vunpack.c.h.b16 %v308
      %v392 = vunpack.c.l.b16 %v309
      %v393 = vunpack.c.h.b16 %v309
      %v394 = vunpack.c.l.b16 %v310
      %v395 = vunpack.c.h.b16 %v310
      %v396 = vunpack.c.l.b16 %v311
      %v397 = vunpack.c.h.b16 %v311
      %v398 = vpack.c.b16 %v392, %v390
      %v399 = vpack.c.b16 %v393, %v391
      %v400 = vpack.c.b16 %v396, %v394
      %v401 = vpack.c.b16 %v397, %v395
      %v407 = vsel %vm339, %v307, 0
      %409 = vmatprep.subr.bf16.mxu0 %v399
      %410 = vmatpush1.bf16.msra.mxu0 %v398
      %411 = vmatprep.subr.bf16.mxu0 %v401
      %412 = vmatpush1.bf16.msra.mxu0 %v400
      %413 = vmatprep.subr.bf16.mxu0 0
      %414 = vmatpush1.bf16.msra.mxu0 0
      %415 = vmatprep.subr.bf16.mxu0 0
      %416 = vmatpush1.bf16.msra.mxu0 0
      %417 = vmatprep.subr.bf16.mxu0 0
      %418 = vmatpush1.bf16.msra.mxu0 0
      %419 = vmatprep.subr.bf16.mxu0 0
      %420 = vmatpush1.bf16.msra.mxu0 0
      %421 = vmatprep.subr.bf16.mxu0 0
      %422 = vmatpush1.bf16.msra.mxu0 0
      %423 = vmatprep.subr.bf16.mxu0 0
      %424 = vmatpush1.bf16.msra.mxu0 0
      %425 = vmatprep.subr.bf16.mxu0 0
      %426 = vmatpush1.bf16.msra.mxu0 0
      %427 = vmatprep.subr.bf16.mxu0 0
      %428 = vmatpush1.bf16.msra.mxu0 0
      %429 = vmatprep.subr.bf16.mxu0 0
      %430 = vmatpush1.bf16.msra.mxu0 0
      %431 = vmatprep.subr.bf16.mxu0 0
      %432 = vmatpush1.bf16.msra.mxu0 0
      %433 = vmatprep.subr.bf16.mxu0 0
      %434 = vmatpush1.bf16.msra.mxu0 0
      %435 = vmatprep.subr.bf16.mxu0 0
      %436 = vmatpush1.bf16.msra.mxu0 0
      %437 = vmatprep.subr.bf16.mxu0 0
      %438 = vmatpush1.bf16.msra.mxu0 0
      %439 = vmatprep.subr.bf16.mxu0 0
      %440 = vmatpush1.bf16.msra.mxu0 0
      %441 = vmatprep.mubr.bf16.mxu0 0
      %442 = vmatmul.mubr.bf16.gmra.mrb[0].mxu0 %v407
      %v443 = vpop.f32.mrb[0].mxu0
      %v444 = vadd.f32 %v378, %v443
      %v445 = vpop.f32.mrb[0].mxu0
      %v446 = vadd.f32 %v380, %v445
      %v447 = vpop.f32.mrb[0].mxu0
      %v448 = vadd.f32 %v382, %v447
      %v449 = vpop.f32.mrb[0].mxu0
      %v450 = vadd.f32 %v384, %v449
      %451 = vdwg.mxu0
      %v452 = vld [vmem:[%s4] sm:$0x3]
      %v454 = vlaneseq
      %v455 = vshrl.u32 %v454, 7
      %v456 = vsub.s32 0, %v455
      %v457 = vrot.slane %v452, %v456
      %v458 = vlaneseq
      %v459 = vshrl.u32 %v458, 7
      %v460 = vsub.s32 1, %v459
      %v461 = vrot.slane %v452, %v460
      %v464 = vadd.f32 %v444, %v457
      %v465 = vadd.f32 %v446, %v461
      %v466 = vadd.f32 %v448, %v457
      %v467 = vadd.f32 %v450, %v461
      %v468 = vmul.f32 %v464, 0.01
      %v469 = vmul.f32 %v465, 0.01
      %v470 = vmul.f32 %v466, 0.01
      %v471 = vmul.f32 %v467, 0.01
      %v472 = vmax.f32 %v464, %v468
      %v473 = vmax.f32 %v465, %v469
      %v474 = vmax.f32 %v466, %v470
      %v475 = vmax.f32 %v467, %v471
      %v476 = vpack.c.bf16 %v474, %v472
      %v477 = vpack.c.bf16 %v475, %v473
      %v478 = vld [vmem:[%s5] sm:$0xf]
      %v479 = vld [vmem:[%s5 + $0x4] sm:$0xf]
      %v480 = vld [vmem:[%s5 + $0x8] sm:$0xf]
      %v481 = vld [vmem:[%s5 + $0xc] sm:$0xf]
      %v482 = vld [vmem:[%s5 + $0x10] sm:$0xf]
      %v483 = vld [vmem:[%s5 + $0x14] sm:$0xf]
      %v484 = vld [vmem:[%s5 + $0x18] sm:$0xf]
      %v485 = vld [vmem:[%s5 + $0x1c] sm:$0xf]
      %v486 = vld [vmem:[%s5 + $0x20] sm:$0xf]
      %v487 = vld [vmem:[%s5 + $0x24] sm:$0xf]
      %v488 = vld [vmem:[%s5 + $0x28] sm:$0xf]
      %v489 = vld [vmem:[%s5 + $0x2c] sm:$0xf]
      %v490 = vld [vmem:[%s5 + $0x30] sm:$0xf]
      %v491 = vld [vmem:[%s5 + $0x34] sm:$0xf]
      %v492 = vld [vmem:[%s5 + $0x38] sm:$0xf]
      %v493 = vld [vmem:[%s5 + $0x3c] sm:$0xf]
      %v494 = vld [vmem:[%s5 + $0x40] sm:$0xf]
      %v495 = vld [vmem:[%s5 + $0x44] sm:$0xf]
      %v496 = vld [vmem:[%s5 + $0x48] sm:$0xf]
      %v497 = vld [vmem:[%s5 + $0x4c] sm:$0xf]
      %v498 = vld [vmem:[%s5 + $0x50] sm:$0xf]
      %v499 = vld [vmem:[%s5 + $0x54] sm:$0xf]
      %v500 = vld [vmem:[%s5 + $0x58] sm:$0xf]
      %v501 = vld [vmem:[%s5 + $0x5c] sm:$0xf]
      %v502 = vld [vmem:[%s5 + $0x60] sm:$0xf]
      %v503 = vld [vmem:[%s5 + $0x64] sm:$0xf]
      %v504 = vld [vmem:[%s5 + $0x68] sm:$0xf]
      %v505 = vld [vmem:[%s5 + $0x6c] sm:$0xf]
      %v506 = vld [vmem:[%s5 + $0x70] sm:$0xf]
      %v507 = vld [vmem:[%s5 + $0x74] sm:$0xf]
      %v508 = vld [vmem:[%s5 + $0x78] sm:$0xf]
      %v509 = vld [vmem:[%s5 + $0x7c] sm:$0xf]
      %v510 = vld [vmem:[%s6] sm:$0x1]
      %v512 = vlaneseq
      %v513 = vshrl.u32 %v512, 7
      %v514 = vsub.s32 0, %v513
      %v515 = vrot.slane %v510, %v514
      %v549 = vunpack.c.l.b16 %v478
      %v550 = vunpack.c.l.b16 %v479
      %v551 = vunpack.c.l.b16 %v480
      %v552 = vunpack.c.l.b16 %v481
      %v553 = vunpack.c.l.b16 %v482
      %v554 = vunpack.c.l.b16 %v483
      %v555 = vunpack.c.l.b16 %v484
      %v556 = vunpack.c.l.b16 %v485
      %v557 = vunpack.c.l.b16 %v486
      %v558 = vunpack.c.l.b16 %v487
      %v559 = vunpack.c.l.b16 %v488
      %v560 = vunpack.c.l.b16 %v489
      %v561 = vunpack.c.l.b16 %v490
      %v562 = vunpack.c.l.b16 %v491
      %v563 = vunpack.c.l.b16 %v492
      %v564 = vunpack.c.l.b16 %v493
      %v565 = vunpack.c.l.b16 %v494
      %v566 = vunpack.c.l.b16 %v495
      %v567 = vunpack.c.l.b16 %v496
      %v568 = vunpack.c.l.b16 %v497
      %v569 = vunpack.c.l.b16 %v498
      %v570 = vunpack.c.l.b16 %v499
      %v571 = vunpack.c.l.b16 %v500
      %v572 = vunpack.c.l.b16 %v501
      %v573 = vunpack.c.l.b16 %v502
      %v574 = vunpack.c.l.b16 %v503
      %v575 = vunpack.c.l.b16 %v504
      %v576 = vunpack.c.l.b16 %v505
      %v577 = vunpack.c.l.b16 %v506
      %v578 = vunpack.c.l.b16 %v507
      %v579 = vunpack.c.l.b16 %v508
      %v580 = vunpack.c.l.b16 %v509
      %v581 = vpack.c.b16 %v550, %v549
      %v582 = vpack.c.b16 %v552, %v551
      %v583 = vpack.c.b16 %v554, %v553
      %v584 = vpack.c.b16 %v556, %v555
      %v585 = vpack.c.b16 %v558, %v557
      %v586 = vpack.c.b16 %v560, %v559
      %v587 = vpack.c.b16 %v562, %v561
      %v588 = vpack.c.b16 %v564, %v563
      %v589 = vpack.c.b16 %v566, %v565
      %v590 = vpack.c.b16 %v568, %v567
      %v591 = vpack.c.b16 %v570, %v569
      %v592 = vpack.c.b16 %v572, %v571
      %v593 = vpack.c.b16 %v574, %v573
      %v594 = vpack.c.b16 %v576, %v575
      %v595 = vpack.c.b16 %v578, %v577
      %v596 = vpack.c.b16 %v580, %v579
      %613 = vmatprep.subr.bf16.mxu0 0
      %614 = vmatpush1.bf16.msra.mxu0 %v581
      %615 = vmatprep.subr.bf16.mxu0 0
      %616 = vmatpush1.bf16.msra.mxu0 %v582
      %617 = vmatprep.subr.bf16.mxu0 0
      %618 = vmatpush1.bf16.msra.mxu0 %v583
      %619 = vmatprep.subr.bf16.mxu0 0
      %620 = vmatpush1.bf16.msra.mxu0 %v584
      %621 = vmatprep.subr.bf16.mxu0 0
      %622 = vmatpush1.bf16.msra.mxu0 %v585
      %623 = vmatprep.subr.bf16.mxu0 0
      %624 = vmatpush1.bf16.msra.mxu0 %v586
      %625 = vmatprep.subr.bf16.mxu0 0
      %626 = vmatpush1.bf16.msra.mxu0 %v587
      %627 = vmatprep.subr.bf16.mxu0 0
      %628 = vmatpush1.bf16.msra.mxu0 %v588
      %629 = vmatprep.subr.bf16.mxu0 0
      %630 = vmatpush1.bf16.msra.mxu0 %v589
      %631 = vmatprep.subr.bf16.mxu0 0
      %632 = vmatpush1.bf16.msra.mxu0 %v590
      %633 = vmatprep.subr.bf16.mxu0 0
      %634 = vmatpush1.bf16.msra.mxu0 %v591
      %635 = vmatprep.subr.bf16.mxu0 0
      %636 = vmatpush1.bf16.msra.mxu0 %v592
      %637 = vmatprep.subr.bf16.mxu0 0
      %638 = vmatpush1.bf16.msra.mxu0 %v593
      %639 = vmatprep.subr.bf16.mxu0 0
      %640 = vmatpush1.bf16.msra.mxu0 %v594
      %641 = vmatprep.subr.bf16.mxu0 0
      %642 = vmatpush1.bf16.msra.mxu0 %v595
      %643 = vmatprep.subr.bf16.mxu0 0
      %644 = vmatpush1.bf16.msra.mxu0 %v596
      %645 = vmatprep.mubr.bf16.mxu0 %v477
      %646 = vmatmul.mubr.bf16.gmra.mrb[0].mxu0 %v476
      %v647 = vpop.f32.mrb[0].mxu0
      %v648 = vadd.f32 %v515, %v647
      %v649 = vpop.f32.mrb[0].mxu0
      %v650 = vpop.f32.mrb[0].mxu0
      %v651 = vadd.f32 %v515, %v650
      %v652 = vpop.f32.mrb[0].mxu0
      %653 = vdwg.mxu0
      %654 = vst [vmem:[%s302] sm:$0xff] %v648
      %655 = vst [vmem:[%s302 + $0x8] sm:$0xff] %v651
      %s656 = smul.u32 2, %s18
      %p657 = scmp.lt.s32.totalorder %s656, 3
      %s658 = scalar_select %p657, %s656, 3
      %s659 = smul.addr %s658, 8
      %s660 = scalar_lea.vmem %s7, %s659
      // Predicated region
      $region49: #{descriptor_network_forward.5} parent=47 // pred_check
        %p661 = pneg %p193
      $region50: #{descriptor_network_forward.5} parent=47 // pred_check_branch
        %663 = sbr.rel (%p661) target = $region52
      $region51: #{descriptor_network_forward.5} parent=47 // pred_region
        %s664 = smul.u32 2, %s18
      $region52: #{descriptor_network_forward.5} parent=47 // pred_fallthru
        _
    $region48: #{descriptor_network_forward.5} parent=5 // pred_fallthru
      _
    %p665 = scmp.le.s32.totalorder 2, %s13
    // Predicated region
    $region53: #{descriptor_network_forward.5} parent=5 // pred_check
      %p666 = pneg %p665
    $region54: #{descriptor_network_forward.5} parent=5 // pred_check_branch
      %668 = sbr.rel (%p666) target = $region56
    $region55: #{descriptor_network_forward.5} parent=5 // pred_region
      %s669 = ssub.s32 %s13, 2
      // Predicated region
      $region57: #{descriptor_network_forward.5} parent=55 // pred_check
        %p670 = pneg %p199
      $region58: #{descriptor_network_forward.5} parent=55 // pred_check_branch
        %672 = sbr.rel (%p670) target = $region60
      $region59: #{descriptor_network_forward.5} parent=55 // pred_region
        %s673 = smul.u32 2, %s19
        %p674 = scmp.lt.s32.totalorder %s673, 3
        %s675 = scalar_select %p674, %s673, 3
        %s676 = smul.addr %s675, 8
        %s677 = scalar_lea.vmem %s7, %s676
      $region60: #{descriptor_network_forward.5} parent=55 // pred_fallthru
        _
    $region56: #{descriptor_network_forward.5} parent=5 // pred_fallthru
      _
  $region6: #{descriptor_network_forward.5} parent=0 // loop_footer
    %s17 = sadd.s32 1, %s13
  $region7: #{descriptor_network_forward.5} parent=0 // loop_footer_branch
    %12 = sbr.rel target = $region3
  $region8: #{descriptor_network_forward.5} parent=0 // loop_exit
    _

// kernel: descriptor_network_forward.7
$region0: #{descriptor_network_forward.7}
  #allocation0 [shape = 'u32[]', space=smem, size = 0x4, offset = 0x4, fixed_abs, tag = 'smem constant byte address 0x4 - core index']
  #allocation1 [shape = 'u32[144,128]{1,0:T(1,128)}', space=vmem, size = 0x12000, scoped, tag = 'internal scratch']
  %s0 = inlined_call_operand.vmem [shape: f32[10,32], index: 0, kind: input, shape index: {}]
  %s1 = inlined_call_operand.vmem [shape: bf16[32,256], index: 1, kind: input, shape index: {}]
  %s2 = inlined_call_operand.vmem [shape: f32[1,256], index: 2, kind: input, shape index: {}]
  %s3 = inlined_call_operand.vmem [shape: bf16[256,128], index: 3, kind: input, shape index: {}]
  %s4 = inlined_call_operand.vmem [shape: f32[1,128], index: 4, kind: input, shape index: {}]
  %s5 = inlined_call_operand.vmem [shape: f32[10,128], index: 5, kind: output, shape index: {}]
  %s6 = sld [smem:[#allocation0]]
  $region53: #{descriptor_network_forward.7} parent=0
    _
  %s8 = ssub.s32 1, %s6
  %s9 = scalar_select 0, %s8, %s6
  loop: start=0, step=1, limit=4
  $region2: #{descriptor_network_forward.7} parent=0 // loop_pre_header
    _
  $region3: #{descriptor_network_forward.7} parent=0 // loop_header
    %s11 = sphi 0, %s15
    %p12 = scmp.ge.s32.totalorder %s11, 4
    %s21 = sphi 0, %s23
    %s24 = sphi 0, %s21
    %s25 = sphi 0, %s24
    %s41 = sphi 0, %s25
    %s45 = sphi 0, %s45
    %s47 = sphi 0, %s45
    %s48 = sphi 0, %s47
    %s62 = sphi 0, %s48
    %s66 = sphi 0, %s66
    %s68 = sphi 0, %s66
    %s69 = sphi 0, %s68
    %s83 = sphi 0, %s69
    %s87 = sphi 0, %s87
    %s89 = sphi 0, %s87
    %s90 = sphi 0, %s89
    %s104 = sphi 0, %s90
    %s108 = sphi 0, %s108
    %s110 = sphi 0, %s108
    %s111 = sphi 0, %s110
    %s125 = sphi 0, %s111
    %s131 = sphi 0, %s133
    %s134 = sphi 0, %s131
    %s135 = sphi 0, %s134
    %s151 = sphi 0, %s135
  $region4: #{descriptor_network_forward.7} parent=0 // loop_header_branch
    %14 = sbr.rel (%p12) target = $region8
  $region5: #{descriptor_network_forward.7} parent=0 // loop_body
    %s16 = ssub.s32 %s11, 1
    %s17 = ssub.s32 %s11, 2
    %s18 = sadd.s32 %s11, 1
    %s19 = ssub.s32 %s11, %s18
    %p20 = scmp.eq.s32.totalorder %s19, 0
    %s22 = sadd.s32 %s21, 1
    %s23 = scalar_select %p20, %s21, %s22
    %p26 = pneg %p20
    %p27 = scmp.eq.s32.totalorder %s11, 1
    %p28 = por %p26, %p27
    %p29 = scmp.ne.s32.totalorder %s21, %s24
    %p30 = scmp.eq.s32.totalorder %s11, 0
    %p31 = por %p29, %p30
    %p32 = scmp.ne.s32.totalorder %s21, %s24
    %p33 = scmp.eq.s32.totalorder %s16, 1
    %p34 = por %p32, %p33
    %p35 = scmp.ne.s32.totalorder %s24, %s25
    %p36 = scmp.eq.s32.totalorder %s16, 0
    %p37 = por %p35, %p36
    %p38 = scmp.ne.s32.totalorder %s24, %s25
    %p39 = scmp.eq.s32.totalorder %s17, 1
    %p40 = por %p38, %p39
    %p42 = scmp.ne.s32.totalorder %s25, %s41
    %p43 = scmp.eq.s32.totalorder %s17, 0
    %p44 = por %p42, %p43
    %s46 = sadd.s32 %s45, 1
    %p49 = scmp.eq.s32.totalorder %s11, 1
    %p50 = scmp.ne.s32.totalorder %s45, %s47
    %p51 = scmp.eq.s32.totalorder %s11, 0
    %p52 = por %p50, %p51
    %p53 = scmp.ne.s32.totalorder %s45, %s47
    %p54 = scmp.eq.s32.totalorder %s16, 1
    %p55 = por %p53, %p54
    %p56 = scmp.ne.s32.totalorder %s47, %s48
    %p57 = scmp.eq.s32.totalorder %s16, 0
    %p58 = por %p56, %p57
    %p59 = scmp.ne.s32.totalorder %s47, %s48
    %p60 = scmp.eq.s32.totalorder %s17, 1
    %p61 = por %p59, %p60
    %p63 = scmp.ne.s32.totalorder %s48, %s62
    %p64 = scmp.eq.s32.totalorder %s17, 0
    %p65 = por %p63, %p64
    %s67 = sadd.s32 %s66, 1
    %p70 = scmp.eq.s32.totalorder %s11, 1
    %p71 = scmp.ne.s32.totalorder %s66, %s68
    %p72 = scmp.eq.s32.totalorder %s11, 0
    %p73 = por %p71, %p72
    %p74 = scmp.ne.s32.totalorder %s66, %s68
    %p75 = scmp.eq.s32.totalorder %s16, 1
    %p76 = por %p74, %p75
    %p77 = scmp.ne.s32.totalorder %s68, %s69
    %p78 = scmp.eq.s32.totalorder %s16, 0
    %p79 = por %p77, %p78
    %p80 = scmp.ne.s32.totalorder %s68, %s69
    %p81 = scmp.eq.s32.totalorder %s17, 1
    %p82 = por %p80, %p81
    %p84 = scmp.ne.s32.totalorder %s69, %s83
    %p85 = scmp.eq.s32.totalorder %s17, 0
    %p86 = por %p84, %p85
    %s88 = sadd.s32 %s87, 1
    %p91 = scmp.eq.s32.totalorder %s11, 1
    %p92 = scmp.ne.s32.totalorder %s87, %s89
    %p93 = scmp.eq.s32.totalorder %s11, 0
    %p94 = por %p92, %p93
    %p95 = scmp.ne.s32.totalorder %s87, %s89
    %p96 = scmp.eq.s32.totalorder %s16, 1
    %p97 = por %p95, %p96
    %p98 = scmp.ne.s32.totalorder %s89, %s90
    %p99 = scmp.eq.s32.totalorder %s16, 0
    %p100 = por %p98, %p99
    %p101 = scmp.ne.s32.totalorder %s89, %s90
    %p102 = scmp.eq.s32.totalorder %s17, 1
    %p103 = por %p101, %p102
    %p105 = scmp.ne.s32.totalorder %s90, %s104
    %p106 = scmp.eq.s32.totalorder %s17, 0
    %p107 = por %p105, %p106
    %s109 = sadd.s32 %s108, 1
    %p112 = scmp.eq.s32.totalorder %s11, 1
    %p113 = scmp.ne.s32.totalorder %s108, %s110
    %p114 = scmp.eq.s32.totalorder %s11, 0
    %p115 = por %p113, %p114
    %p116 = scmp.ne.s32.totalorder %s108, %s110
    %p117 = scmp.eq.s32.totalorder %s16, 1
    %p118 = por %p116, %p117
    %p119 = scmp.ne.s32.totalorder %s110, %s111
    %p120 = scmp.eq.s32.totalorder %s16, 0
    %p121 = por %p119, %p120
    %p122 = scmp.ne.s32.totalorder %s110, %s111
    %p123 = scmp.eq.s32.totalorder %s17, 1
    %p124 = por %p122, %p123
    %p126 = scmp.ne.s32.totalorder %s111, %s125
    %p127 = scmp.eq.s32.totalorder %s17, 0
    %p128 = por %p126, %p127
    %s129 = ssub.s32 %s11, %s18
    %p130 = scmp.eq.s32.totalorder %s129, 0
    %s132 = sadd.s32 %s131, 1
    %s133 = scalar_select %p130, %s131, %s132
    %p136 = pneg %p130
    %p137 = scmp.eq.s32.totalorder %s11, 1
    %p138 = por %p136, %p137
    %p139 = scmp.ne.s32.totalorder %s131, %s134
    %p140 = scmp.eq.s32.totalorder %s11, 0
    %p141 = por %p139, %p140
    %p142 = scmp.ne.s32.totalorder %s131, %s134
    %p143 = scmp.eq.s32.totalorder %s16, 1
    %p144 = por %p142, %p143
    %p145 = scmp.ne.s32.totalorder %s134, %s135
    %p146 = scmp.eq.s32.totalorder %s16, 0
    %p147 = por %p145, %p146
    %p148 = scmp.ne.s32.totalorder %s134, %s135
    %p149 = scmp.eq.s32.totalorder %s17, 1
    %p150 = por %p148, %p149
    %p152 = scmp.ne.s32.totalorder %s135, %s151
    %p153 = scmp.eq.s32.totalorder %s17, 0
    %p154 = por %p152, %p153
    %p155 = scmp.le.s32.totalorder 1, %s11
    %p156 = scmp.lt.s32.totalorder %s11, 3
    %p157 = pnand %p155, %p156
    %p158 = pneg %p157
    // Predicated region
    $region9: #{descriptor_network_forward.7} parent=5 // pred_check
      _
    $region10: #{descriptor_network_forward.7} parent=5 // pred_check_branch
      %160 = sbr.rel (%p157) target = $region12
    $region11: #{descriptor_network_forward.7} parent=5 // pred_region
      %s161 = ssub.s32 %s11, 1
      // Predicated region
      $region13: #{descriptor_network_forward.7} parent=11 // pred_check
        %p162 = pneg %p58
      $region14: #{descriptor_network_forward.7} parent=11 // pred_check_branch
        %164 = sbr.rel (%p162) target = $region16
      $region15: #{descriptor_network_forward.7} parent=11 // pred_region
        _
      $region16: #{descriptor_network_forward.7} parent=11 // pred_fallthru
        _
      // Predicated region
      $region17: #{descriptor_network_forward.7} parent=11 // pred_check
        %p165 = pneg %p79
      $region18: #{descriptor_network_forward.7} parent=11 // pred_check_branch
        %167 = sbr.rel (%p165) target = $region20
      $region19: #{descriptor_network_forward.7} parent=11 // pred_region
        _
      $region20: #{descriptor_network_forward.7} parent=11 // pred_fallthru
        _
      // Predicated region
      $region21: #{descriptor_network_forward.7} parent=11 // pred_check
        %p168 = pneg %p100
      $region22: #{descriptor_network_forward.7} parent=11 // pred_check_branch
        %170 = sbr.rel (%p168) target = $region24
      $region23: #{descriptor_network_forward.7} parent=11 // pred_region
        _
      $region24: #{descriptor_network_forward.7} parent=11 // pred_fallthru
        _
      // Predicated region
      $region25: #{descriptor_network_forward.7} parent=11 // pred_check
        %p171 = pneg %p121
      $region26: #{descriptor_network_forward.7} parent=11 // pred_check_branch
        %173 = sbr.rel (%p171) target = $region28
      $region27: #{descriptor_network_forward.7} parent=11 // pred_region
        _
      $region28: #{descriptor_network_forward.7} parent=11 // pred_fallthru
        _
    $region12: #{descriptor_network_forward.7} parent=5 // pred_fallthru
      _
    %p174 = scmp.lt.s32.totalorder %s11, 2
    // Predicated region
    $region29: #{descriptor_network_forward.7} parent=5 // pred_check
      %p175 = pneg %p174
    $region30: #{descriptor_network_forward.7} parent=5 // pred_check_branch
      %177 = sbr.rel (%p175) target = $region32
    $region31: #{descriptor_network_forward.7} parent=5 // pred_region
      // Predicated region
      $region33: #{descriptor_network_forward.7} parent=31 // pred_check
        %p178 = pneg %p31
      $region34: #{descriptor_network_forward.7} parent=31 // pred_check_branch
        %180 = sbr.rel (%p178) target = $region36
      $region35: #{descriptor_network_forward.7} parent=31 // pred_region
        %p181 = scmp.lt.s32.totalorder %s11, 1
        %s182 = scalar_select %p181, %s11, 1
        %s183 = smul.addr %s182, 8
        %s184 = scalar_lea.vmem %s0, %s183
      $region36: #{descriptor_network_forward.7} parent=31 // pred_fallthru
        _
    $region32: #{descriptor_network_forward.7} parent=5 // pred_fallthru
      _
    %p185 = scmp.le.s32.totalorder 1, %s11
    %p186 = scmp.lt.s32.totalorder %s11, 3
    %p187 = pnand %p185, %p186
    %p188 = pneg %p187
    // Predicated region
    $region37: #{descriptor_network_forward.7} parent=5 // pred_check
      _
    $region38: #{descriptor_network_forward.7} parent=5 // pred_check_branch
      %190 = sbr.rel (%p187) target = $region40
    $region39: #{descriptor_network_forward.7} parent=5 // pred_region
      %s191 = ssub.s32 %s11, 1
      %p192 = scmp.lt.s32.totalorder %s16, 1
      %s193 = scalar_select %p192, %s16, 1
      %s194 = smul.addr %s193, 8
      %s195 = scalar_lea.vmem %s0, %s194
      %p196 = pneg %p37
      %p197 = pneg %p34
      %p198 = pneg %p58
      %p199 = pneg %p55
      %p200 = pneg %p79
      %p201 = pneg %p76
      %p202 = pneg %p100
      %p203 = pneg %p97
      %p204 = pneg %p121
      %p205 = pneg %p118
      %p206 = pneg %p147
      %p207 = pneg %p144
      %p208 = scmp.lt.s32.totalorder %s16, 1
      %s209 = scalar_select %p208, %s16, 1
      %s210 = smul.addr %s209, 8
      %s211 = scalar_lea.vmem %s5, %s210
      %p212 = scmp.lt.s32.totalorder %s16, 1
      %s213 = scalar_select %p212, %s16, 1
      %s214 = smul.addr %s213, 8
      %s215 = scalar_lea.vmem %s0, %s214
      %p216 = scmp.lt.s32.totalorder %s16, 1
      %s217 = scalar_select %p216, %s16, 1
      %s218 = smul.addr %s217, 8
      %s219 = scalar_lea.vmem %s5, %s218
      %v221 = vld [vmem:[%s215] sm:$0xff]
      %v222 = vpack.c.bf16 %v221, %v221
      %v223 = vld [vmem:[%s1] sm:$0xff]
      %v224 = vld [vmem:[%s1 + $0x8] sm:$0xff]
      %v225 = vld [vmem:[%s1 + $0x10] sm:$0xff]
      %v226 = vld [vmem:[%s1 + $0x18] sm:$0xff]
      %v227 = vld [vmem:[%s2] sm:$0x3]
      %v229 = vlaneseq
      %v230 = vshrl.u32 %v229, 7
      %v231 = vsub.s32 0, %v230
      %v232 = vrot.slane %v227, %v231
      %v233 = vlaneseq
      %v234 = vshrl.u32 %v233, 7
      %v235 = vsub.s32 1, %v234
      %v236 = vrot.slane %v227, %v235
      %v243 = vunpack.c.l.b16 %v223
      %v244 = vunpack.c.h.b16 %v223
      %v245 = vunpack.c.l.b16 %v224
      %v246 = vunpack.c.h.b16 %v224
      %v247 = vunpack.c.l.b16 %v225
      %v248 = vunpack.c.h.b16 %v225
      %v249 = vunpack.c.l.b16 %v226
      %v250 = vunpack.c.h.b16 %v226
      %v251 = vpack.c.b16 %v245, %v243
      %v252 = vpack.c.b16 %v246, %v244
      %v253 = vpack.c.b16 %v249, %v247
      %v254 = vpack.c.b16 %v250, %v248
      %vm259 = vcmask 261120
      %v261 = vsel %vm259, %v222, 0
      %263 = vmatprep.subr.bf16.mxu0 %v252
      %264 = vmatpush1.bf16.msra.mxu0 %v251
      %265 = vmatprep.subr.bf16.mxu0 %v254
      %266 = vmatpush1.bf16.msra.mxu0 %v253
      %267 = vmatprep.subr.bf16.mxu0 0
      %268 = vmatpush1.bf16.msra.mxu0 0
      %269 = vmatprep.subr.bf16.mxu0 0
      %270 = vmatpush1.bf16.msra.mxu0 0
      %271 = vmatprep.subr.bf16.mxu0 0
      %272 = vmatpush1.bf16.msra.mxu0 0
      %273 = vmatprep.subr.bf16.mxu0 0
      %274 = vmatpush1.bf16.msra.mxu0 0
      %275 = vmatprep.subr.bf16.mxu0 0
      %276 = vmatpush1.bf16.msra.mxu0 0
      %277 = vmatprep.subr.bf16.mxu0 0
      %278 = vmatpush1.bf16.msra.mxu0 0
      %279 = vmatprep.subr.bf16.mxu0 0
      %280 = vmatpush1.bf16.msra.mxu0 0
      %281 = vmatprep.subr.bf16.mxu0 0
      %282 = vmatpush1.bf16.msra.mxu0 0
      %283 = vmatprep.subr.bf16.mxu0 0
      %284 = vmatpush1.bf16.msra.mxu0 0
      %285 = vmatprep.subr.bf16.mxu0 0
      %286 = vmatpush1.bf16.msra.mxu0 0
      %287 = vmatprep.subr.bf16.mxu0 0
      %288 = vmatpush1.bf16.msra.mxu0 0
      %289 = vmatprep.subr.bf16.mxu0 0
      %290 = vmatpush1.bf16.msra.mxu0 0
      %291 = vmatprep.subr.bf16.mxu0 0
      %292 = vmatpush1.bf16.msra.mxu0 0
      %293 = vmatprep.subr.bf16.mxu0 0
      %294 = vmatpush1.bf16.msra.mxu0 0
      %295 = vmatprep.mubr.bf16.mxu0 0
      %296 = vmatmul.mubr.bf16.gmra.mrb[0].mxu0 %v261
      %v297 = vpop.f32.mrb[0].mxu0
      %v298 = vadd.f32 %v232, %v297
      %v299 = vpop.f32.mrb[0].mxu0
      %v300 = vadd.f32 %v236, %v299
      %v301 = vpop.f32.mrb[0].mxu0
      %v302 = vpop.f32.mrb[0].mxu0
      %303 = vdwg.mxu0
      %v304 = vmul.f32 %v298, 0.01
      %v305 = vmul.f32 %v300, 0.01
      %v306 = vmax.f32 %v298, %v304
      %v307 = vmax.f32 %v300, %v305
      %v308 = vpack.c.bf16 %v306, %v306
      %v309 = vpack.c.bf16 %v307, %v307
      %v310 = vld [vmem:[%s3] sm:$0xf]
      %v311 = vld [vmem:[%s3 + $0x4] sm:$0xf]
      %v312 = vld [vmem:[%s3 + $0x8] sm:$0xf]
      %v313 = vld [vmem:[%s3 + $0xc] sm:$0xf]
      %v314 = vld [vmem:[%s3 + $0x10] sm:$0xf]
      %v315 = vld [vmem:[%s3 + $0x14] sm:$0xf]
      %v316 = vld [vmem:[%s3 + $0x18] sm:$0xf]
      %v317 = vld [vmem:[%s3 + $0x1c] sm:$0xf]
      %v318 = vld [vmem:[%s3 + $0x20] sm:$0xf]
      %v319 = vld [vmem:[%s3 + $0x24] sm:$0xf]
      %v320 = vld [vmem:[%s3 + $0x28] sm:$0xf]
      %v321 = vld [vmem:[%s3 + $0x2c] sm:$0xf]
      %v322 = vld [vmem:[%s3 + $0x30] sm:$0xf]
      %v323 = vld [vmem:[%s3 + $0x34] sm:$0xf]
      %v324 = vld [vmem:[%s3 + $0x38] sm:$0xf]
      %v325 = vld [vmem:[%s3 + $0x3c] sm:$0xf]
      %v326 = vld [vmem:[%s3 + $0x40] sm:$0xf]
      %v327 = vld [vmem:[%s3 + $0x44] sm:$0xf]
      %v328 = vld [vmem:[%s3 + $0x48] sm:$0xf]
      %v329 = vld [vmem:[%s3 + $0x4c] sm:$0xf]
      %v330 = vld [vmem:[%s3 + $0x50] sm:$0xf]
      %v331 = vld [vmem:[%s3 + $0x54] sm:$0xf]
      %v332 = vld [vmem:[%s3 + $0x58] sm:$0xf]
      %v333 = vld [vmem:[%s3 + $0x5c] sm:$0xf]
      %v334 = vld [vmem:[%s3 + $0x60] sm:$0xf]
      %v335 = vld [vmem:[%s3 + $0x64] sm:$0xf]
      %v336 = vld [vmem:[%s3 + $0x68] sm:$0xf]
      %v337 = vld [vmem:[%s3 + $0x6c] sm:$0xf]
      %v338 = vld [vmem:[%s3 + $0x70] sm:$0xf]
      %v339 = vld [vmem:[%s3 + $0x74] sm:$0xf]
      %v340 = vld [vmem:[%s3 + $0x78] sm:$0xf]
      %v341 = vld [vmem:[%s3 + $0x7c] sm:$0xf]
      %v342 = vld [vmem:[%s4] sm:$0x1]
      %v344 = vlaneseq
      %v345 = vshrl.u32 %v344, 7
      %v346 = vsub.s32 0, %v345
      %v347 = vrot.slane %v342, %v346
      %v381 = vunpack.c.l.b16 %v310
      %v382 = vunpack.c.l.b16 %v311
      %v383 = vunpack.c.l.b16 %v312
      %v384 = vunpack.c.l.b16 %v313
      %v385 = vunpack.c.l.b16 %v314
      %v386 = vunpack.c.l.b16 %v315
      %v387 = vunpack.c.l.b16 %v316
      %v388 = vunpack.c.l.b16 %v317
      %v389 = vunpack.c.l.b16 %v318
      %v390 = vunpack.c.l.b16 %v319
      %v391 = vunpack.c.l.b16 %v320
      %v392 = vunpack.c.l.b16 %v321
      %v393 = vunpack.c.l.b16 %v322
      %v394 = vunpack.c.l.b16 %v323
      %v395 = vunpack.c.l.b16 %v324
      %v396 = vunpack.c.l.b16 %v325
      %v397 = vunpack.c.l.b16 %v326
      %v398 = vunpack.c.l.b16 %v327
      %v399 = vunpack.c.l.b16 %v328
      %v400 = vunpack.c.l.b16 %v329
      %v401 = vunpack.c.l.b16 %v330
      %v402 = vunpack.c.l.b16 %v331
      %v403 = vunpack.c.l.b16 %v332
      %v404 = vunpack.c.l.b16 %v333
      %v405 = vunpack.c.l.b16 %v334
      %v406 = vunpack.c.l.b16 %v335
      %v407 = vunpack.c.l.b16 %v336
      %v408 = vunpack.c.l.b16 %v337
      %v409 = vunpack.c.l.b16 %v338
      %v410 = vunpack.c.l.b16 %v339
      %v411 = vunpack.c.l.b16 %v340
      %v412 = vunpack.c.l.b16 %v341
      %v413 = vpack.c.b16 %v382, %v381
      %v414 = vpack.c.b16 %v384, %v383
      %v415 = vpack.c.b16 %v386, %v385
      %v416 = vpack.c.b16 %v388, %v387
      %v417 = vpack.c.b16 %v390, %v389
      %v418 = vpack.c.b16 %v392, %v391
      %v419 = vpack.c.b16 %v394, %v393
      %v420 = vpack.c.b16 %v396, %v395
      %v421 = vpack.c.b16 %v398, %v397
      %v422 = vpack.c.b16 %v400, %v399
      %v423 = vpack.c.b16 %v402, %v401
      %v424 = vpack.c.b16 %v404, %v403
      %v425 = vpack.c.b16 %v406, %v405
      %v426 = vpack.c.b16 %v408, %v407
      %v427 = vpack.c.b16 %v410, %v409
      %v428 = vpack.c.b16 %v412, %v411
      %445 = vmatprep.subr.bf16.mxu0 0
      %446 = vmatpush1.bf16.msra.mxu0 %v413
      %447 = vmatprep.subr.bf16.mxu0 0
      %448 = vmatpush1.bf16.msra.mxu0 %v414
      %449 = vmatprep.subr.bf16.mxu0 0
      %450 = vmatpush1.bf16.msra.mxu0 %v415
      %451 = vmatprep.subr.bf16.mxu0 0
      %452 = vmatpush1.bf16.msra.mxu0 %v416
      %453 = vmatprep.subr.bf16.mxu0 0
      %454 = vmatpush1.bf16.msra.mxu0 %v417
      %455 = vmatprep.subr.bf16.mxu0 0
      %456 = vmatpush1.bf16.msra.mxu0 %v418
      %457 = vmatprep.subr.bf16.mxu0 0
      %458 = vmatpush1.bf16.msra.mxu0 %v419
      %459 = vmatprep.subr.bf16.mxu0 0
      %460 = vmatpush1.bf16.msra.mxu0 %v420
      %461 = vmatprep.subr.bf16.mxu0 0
      %462 = vmatpush1.bf16.msra.mxu0 %v421
      %463 = vmatprep.subr.bf16.mxu0 0
      %464 = vmatpush1.bf16.msra.mxu0 %v422
      %465 = vmatprep.subr.bf16.mxu0 0
      %466 = vmatpush1.bf16.msra.mxu0 %v423
      %467 = vmatprep.subr.bf16.mxu0 0
      %468 = vmatpush1.bf16.msra.mxu0 %v424
      %469 = vmatprep.subr.bf16.mxu0 0
      %470 = vmatpush1.bf16.msra.mxu0 %v425
      %471 = vmatprep.subr.bf16.mxu0 0
      %472 = vmatpush1.bf16.msra.mxu0 %v426
      %473 = vmatprep.subr.bf16.mxu0 0
      %474 = vmatpush1.bf16.msra.mxu0 %v427
      %475 = vmatprep.subr.bf16.mxu0 0
      %476 = vmatpush1.bf16.msra.mxu0 %v428
      %477 = vmatprep.mubr.bf16.mxu0 %v309
      %478 = vmatmul.mubr.bf16.gmra.mrb[0].mxu0 %v308
      %v479 = vpop.f32.mrb[0].mxu0
      %v480 = vadd.f32 %v347, %v479
      %v481 = vpop.f32.mrb[0].mxu0
      %v482 = vpop.f32.mrb[0].mxu0
      %v483 = vpop.f32.mrb[0].mxu0
      %484 = vdwg.mxu0
      %485 = vst [vmem:[%s219] sm:$0xff] %v480
      %p486 = scmp.lt.s32.totalorder %s16, 1
      %s487 = scalar_select %p486, %s16, 1
      %s488 = smul.addr %s487, 8
      %s489 = scalar_lea.vmem %s5, %s488
      // Predicated region
      $region41: #{descriptor_network_forward.7} parent=39 // pred_check
        %p490 = pneg %p144
      $region42: #{descriptor_network_forward.7} parent=39 // pred_check_branch
        %492 = sbr.rel (%p490) target = $region44
      $region43: #{descriptor_network_forward.7} parent=39 // pred_region
        _
      $region44: #{descriptor_network_forward.7} parent=39 // pred_fallthru
        _
    $region40: #{descriptor_network_forward.7} parent=5 // pred_fallthru
      _
    %p493 = scmp.le.s32.totalorder 2, %s11
    // Predicated region
    $region45: #{descriptor_network_forward.7} parent=5 // pred_check
      %p494 = pneg %p493
    $region46: #{descriptor_network_forward.7} parent=5 // pred_check_branch
      %496 = sbr.rel (%p494) target = $region48
    $region47: #{descriptor_network_forward.7} parent=5 // pred_region
      %s497 = ssub.s32 %s11, 2
      // Predicated region
      $region49: #{descriptor_network_forward.7} parent=47 // pred_check
        %p498 = pneg %p150
      $region50: #{descriptor_network_forward.7} parent=47 // pred_check_branch
        %500 = sbr.rel (%p498) target = $region52
      $region51: #{descriptor_network_forward.7} parent=47 // pred_region
        %p501 = scmp.lt.s32.totalorder %s17, 1
        %s502 = scalar_select %p501, %s17, 1
        %s503 = smul.addr %s502, 8
        %s504 = scalar_lea.vmem %s5, %s503
      $region52: #{descriptor_network_forward.7} parent=47 // pred_fallthru
        _
    $region48: #{descriptor_network_forward.7} parent=5 // pred_fallthru
      _
  $region6: #{descriptor_network_forward.7} parent=0 // loop_footer
    %s15 = sadd.s32 1, %s11
  $region7: #{descriptor_network_forward.7} parent=0 // loop_footer_branch
    %10 = sbr.rel target = $region3
  $region8: #{descriptor_network_forward.7} parent=0 // loop_exit
    _

</llo_original>
